<compile_context>
chip_gen: v5e
topology: v5e:2x2
jax: 0.10.0
libtpu: 0.0.40
codegen_flags: <defaults>
</compile_context>

<pallas_src>
import functools
import math

import jax
import jax.numpy as jnp
from jax.experimental import pallas as pl
from jax.experimental.pallas import tpu as pltpu


_GELU_C = math.sqrt(2.0 / math.pi)


def _gelu_tanh(x):
    # PyTorch nn.GELU(approximate='tanh'):
    #   0.5 * x * (1 + tanh(sqrt(2/pi) * (x + 0.044715 * x^3)))
    return 0.5 * x * (1.0 + jnp.tanh(_GELU_C * (x + 0.044715 * x * x * x)))


def _round_up(x, m):
    return (x + m - 1) // m * m


def _pick_th(H, th_request):
    """Largest chunk <= th_request that divides H; prefer 256 alignment
    (v6e/v7x MXU is 2x256x256), fall back to 128 alignment, else full H."""
    if H % 128 != 0:
        return H
    for align in (256, 128):
        if H % align != 0:
            continue
        th = min(max((int(th_request) // align) * align, align), H)
        while th > align and H % th != 0:
            th -= align
        if H % th == 0:
            return th
    return H


def _tpu_vmem_bytes():
    """Per-TensorCore VMEM capacity; conservative 64 MiB fallback (v7x size)
    so a failed query can never request more VMEM than any chip has."""
    try:
        return int(pltpu.get_tpu_info().vmem_capacity_bytes)
    except Exception:  # hardware query unavailable on this backend/build
        return 64 * 1024 * 1024


# ---------------------------------------------------------------------------
# Kernels
# ---------------------------------------------------------------------------

def _mlp_kernel_resident(x_ref, wfc_ref, bfc_ref, wproj_ref, bproj_ref, o_ref,
                         *, th, n_chunks, compute_dtype):
    # x_ref: (tm, C); wfc: (C, H); bfc: (1, H); wproj: (H, C); bproj: (1, C)
    # Full weights live in VMEM (grid over M only); H is chunked *inside* the
    # kernel so the (tm, th) intermediate stays small and GELU overlaps MXU.
    x = x_ref[...].astype(compute_dtype)
    acc = jnp.broadcast_to(bproj_ref[...].astype(jnp.float32), o_ref.shape)
    for j in range(n_chunks):                 # static slices -> free ref views
        lo, hi = j * th, (j + 1) * th
        h = jnp.dot(x, wfc_ref[:, lo:hi], preferred_element_type=jnp.float32)
        h = _gelu_tanh(h + bfc_ref[:, lo:hi].astype(jnp.float32))
        p = h.astype(compute_dtype)           # MXU LHS at compute dtype
        acc = acc + jnp.dot(p, wproj_ref[lo:hi, :],
                            preferred_element_type=jnp.float32)
    o_ref[...] = acc.astype(o_ref.dtype)


def _mlp_kernel_htiled(x_ref, wfc_ref, bfc_ref, wproj_ref, bproj_ref, o_ref,
                       acc_ref, *, compute_dtype):
    # grid = (M tiles, H chunks); H is the last ("arbitrary") reduction axis.
    j = pl.program_id(1)

    @pl.when(j == 0)
    def _():
        # Seed the accumulator with the c_proj bias: saves a full (tm, C)
        # read+add pass in the finalize branch.
        acc_ref[...] = jnp.broadcast_to(
            bproj_ref[...].astype(jnp.float32), acc_ref.shape)

    x = x_ref[...].astype(compute_dtype)
    h = jnp.dot(x, wfc_ref[...], preferred_element_type=jnp.float32)
    h = _gelu_tanh(h + bfc_ref[...].astype(jnp.float32))
    p = h.astype(compute_dtype)
    acc_ref[...] += jnp.dot(p, wproj_ref[...],
                            preferred_element_type=jnp.float32)

    @pl.when(j == pl.num_programs(1) - 1)
    def _():
        o_ref[...] = acc_ref[...].astype(o_ref.dtype)


# ---------------------------------------------------------------------------
# Wrapper
# ---------------------------------------------------------------------------

def mlp_pallas(x, w_fc, b_fc, w_proj, b_proj, *, tm=None, th=None,
               compute_dtype=None, force_path=None):
    """x: [B, T, C]; w_fc: [C, H]; b_fc: [H]; w_proj: [H, C]; b_proj: [C].

    compute_dtype: dtype used for the two MXU dots (e.g. jnp.bfloat16);
        accumulation is always f32.  Default: x.dtype.
    force_path: None (auto) | "resident" | "htiled"  (testing hook).
    """
    B, T, C = x.shape
    C2, H = w_fc.shape
    assert C2 == C and w_proj.shape == (H, C)
    assert b_fc.shape == (H,) and b_proj.shape == (C,)

    M = B * T
    in_dtype = x.dtype
    cdt = jnp.dtype(compute_dtype) if compute_dtype is not None else jnp.dtype(in_dtype)
    act_b = jnp.dtype(in_dtype).itemsize
    cb = cdt.itemsize

    # --- generation-aware VMEM budgets -------------------------------------
    vmem_cap = _tpu_vmem_bytes()
    small_vmem = vmem_cap <= 96 * 1024 * 1024          # v7x-like: 64 MiB/TC, 2 TCs
    vmem_cap_limit = (56 if small_vmem else 100) * 1024 * 1024
    weight_budget = (22 if small_vmem else 40) * 1024 * 1024

    # --- row (token) tiling --------------------------------------------------
    if tm is None:
        tm = 256 if small_vmem else 512
    tm_eff = max(8, min(_round_up(int(tm), 8), _round_up(M, 8)))
    if small_vmem and M >= 16 and pl.cdiv(M, tm_eff) < 2:
        # 2 TensorCores per chip: make the "parallel" M axis shardable.
        tm_eff = max(8, _round_up(pl.cdiv(M, 2), 8))
    n_m = pl.cdiv(M, tm_eff)                  # ragged last tile handled by Pallas

    # --- ship weights at the compute dtype (halves DMA bytes for bf16) ------
    if jnp.dtype(w_fc.dtype) != cdt:
        w_fc = w_fc.astype(cdt)
        w_proj = w_proj.astype(cdt)
    wb = cdt.itemsize

    x2 = x.reshape(M, C)
    b_fc2 = b_fc.reshape(1, H)
    b_proj2 = b_proj.reshape(1, C)
    out_shape = jax.ShapeDtypeStruct((M, C), in_dtype)

    # --- VMEM footprint estimates (grid-invariant blocks are still double-
    #     buffered by default, hence the 2x on weights) -----------------------
    th_req = 512 if th is None else int(th)
    th_res = _pick_th(H, th_req)              # in-kernel chunk for resident path
    n_chunks = H // th_res

    def resident_vmem():
        tiles = 2 * tm_eff * C * (act_b + act_b)          # x + out, 2 buffers
        weights = 2 * 2 * C * H * wb                       # both weights, 2 buffers
        biases = 2 * (H + C) * 4 * 2
        inter = tm_eff * th_res * (4 + cb)                 # f32 h + cast copy
        acc = tm_eff * C * 4
        return tiles + weights + biases + inter + acc

    def htiled_vmem(th_eff):
        tiles = 2 * tm_eff * C * (act_b + act_b)
        weights = 2 * (C * th_eff + th_eff * C) * wb
        biases = 2 * (th_eff + C) * 4
        inter = tm_eff * th_eff * (4 + cb)
        acc = tm_eff * C * 4
        return tiles + weights + biases + inter + acc

    use_resident = (2 * C * H * wb <= weight_budget and
                    resident_vmem() * 1.3 <= vmem_cap_limit)
    if force_path == "resident":
        use_resident = True
    elif force_path == "htiled":
        use_resident = False

    if use_resident:
        grid = (n_m,)
        kernel = functools.partial(_mlp_kernel_resident,
                                   th=th_res, n_chunks=n_chunks,
                                   compute_dtype=cdt)
        in_specs = [
            pl.BlockSpec((tm_eff, C), lambda i: (i, 0)),
            pl.BlockSpec((C, H), lambda i: (0, 0)),        # grid-invariant
            pl.BlockSpec((1, H), lambda i: (0, 0)),
            pl.BlockSpec((H, C), lambda i: (0, 0)),        # grid-invariant
            pl.BlockSpec((1, C), lambda i: (0, 0)),
        ]
        out_specs = pl.BlockSpec((tm_eff, C), lambda i: (i, 0))
        scratch = []
        semantics = ("parallel",)
        est = resident_vmem()
    else:
        th_eff = _pick_th(H, th_req)
        # Shrink the streamed chunk if its footprint would blow the per-core cap.
        while th_eff > 256 and htiled_vmem(th_eff) * 1.3 > vmem_cap_limit:
            new_th = _pick_th(H, th_eff // 2)
            if new_th >= th_eff:
                break
            th_eff = new_th
        n_h = H // th_eff

        grid = (n_m, n_h)
        kernel = functools.partial(_mlp_kernel_htiled, compute_dtype=cdt)
        in_specs = [
            pl.BlockSpec((tm_eff, C), lambda i, j: (i, 0)),
            pl.BlockSpec((C, th_eff), lambda i, j: (0, j)),
            pl.BlockSpec((1, th_eff), lambda i, j: (0, j)),
            pl.BlockSpec((th_eff, C), lambda i, j: (j, 0)),
            pl.BlockSpec((1, C), lambda i, j: (0, 0)),
        ]
        out_specs = pl.BlockSpec((tm_eff, C), lambda i, j: (i, 0))
        scratch = [pltpu.VMEM((tm_eff, C), jnp.float32)]
        semantics = ("parallel", "arbitrary")
        est = htiled_vmem(th_eff)

    vmem_limit = int(min(max(est * 1.3, 32 * 1024 * 1024), vmem_cap_limit))

    out = pl.pallas_call(
        kernel,
        out_shape=out_shape,
        grid=grid,
        in_specs=in_specs,
        out_specs=out_specs,
        scratch_shapes=scratch,
        compiler_params=pltpu.CompilerParams(
            dimension_semantics=semantics,
            vmem_limit_bytes=vmem_limit),
    )(x2, w_fc, b_fc2, w_proj, b_proj2)

    return out.reshape(B, T, C)


# ---------------------------------------------------------------------------
# Pure-JAX reference
# ---------------------------------------------------------------------------

def mlp_reference(x, w_fc, b_fc, w_proj, b_proj):
    h = jnp.einsum("btc,ch->bth", x, w_fc) + b_fc
    h = _gelu_tanh(h)
    return jnp.einsum("bth,hc->btc", h, w_proj) + b_proj


if __name__ == "__main__":
    # Small GPT-ish config: n_embd=128 -> hidden=512.
    C = 128
    H = 4 * C

    key = jax.random.PRNGKey(0)
    kx1, kx2, kx3, kw1, kb1, kw2, kb2 = jax.random.split(key, 7)

    # nn.Linear default init ~ U(-1/sqrt(fan_in), 1/sqrt(fan_in)); deterministic.
    w_fc = jax.random.uniform(kw1, (C, H), jnp.float32, -1.0, 1.0) / math.sqrt(C)
    b_fc = jax.random.uniform(kb1, (H,), jnp.float32, -1.0, 1.0) / math.sqrt(C)
    w_proj = jax.random.uniform(kw2, (H, C), jnp.float32, -1.0, 1.0) / math.sqrt(H)
    b_proj = jax.random.uniform(kb2, (C,), jnp.float32, -1.0, 1.0) / math.sqrt(H)

    # Config 1: weight-resident path (in-kernel H chunking), f32 compute.
    B1, T1 = 2, 128
    x1 = jax.random.normal(kx1, (B1, T1, C), dtype=jnp.float32)
    out1 = jax.block_until_ready(mlp_pallas(x1, w_fc, b_fc, w_proj, b_proj))
    ref1 = mlp_reference(x1, w_fc, b_fc, w_proj, b_proj)
    assert out1.shape == (B1, T1, C)
    assert jnp.allclose(out1, ref1, atol=2e-4, rtol=2e-4), "mismatch (resident)"

    # Config 2: H-tiled accumulator path with a ragged last M tile
    # (M = 240, tm = 64 -> grid 4, last block 48 valid rows; th -> 256, 2 chunks).
    B2, T2 = 2, 120
    x2 = jax.random.normal(kx2, (B2, T2, C), dtype=jnp.float32)
    out2 = jax.block_until_ready(
        mlp_pallas(x2, w_fc, b_fc, w_proj, b_proj, tm=64, th=128,
                   force_path="htiled"))
    ref2 = mlp_reference(x2, w_fc, b_fc, w_proj, b_proj)
    assert out2.shape == (B2, T2, C)
    assert jnp.allclose(out2, ref2, atol=2e-4, rtol=2e-4), "mismatch (H-tiled)"

    # Config 3: bf16 MXU path (weights + activations cast to bf16, f32 accum).
    B3, T3 = 2, 64
    x3 = jax.random.normal(kx3, (B3, T3, C), dtype=jnp.float32)
    out3 = jax.block_until_ready(
        mlp_pallas(x3, w_fc, b_fc, w_proj, b_proj,
                   compute_dtype=jnp.bfloat16))
    ref3 = mlp_reference(x3, w_fc, b_fc, w_proj, b_proj)
    assert out3.shape == (B3, T3, C)
    assert jnp.allclose(out3, ref3, atol=5e-2, rtol=5e-2), "mismatch (bf16)"

    print("KERNEL_OK")
</pallas_src>

<mosaic_0001>
module attributes {stable_mosaic.version = 11 : i64} {
  func.func @_mlp_kernel_resident(%arg0: i32, %arg1: memref<128x128xf32, #tpu.memory_space<vmem>>, %arg2: memref<128x512xf32, #tpu.memory_space<vmem>>, %arg3: memref<1x512xf32, #tpu.memory_space<vmem>>, %arg4: memref<512x128xf32, #tpu.memory_space<vmem>>, %arg5: memref<1x128xf32, #tpu.memory_space<vmem>>, %arg6: memref<128x128xf32, #tpu.memory_space<vmem>>) attributes {dimension_semantics = [#tpu.dimension_semantics<parallel>], iteration_bounds = array<i64: 2>, scalar_prefetch = 0 : i64, scratch_operands = 0 : i64, tpu.core_type = #tpu.core_type<tc>, window_params = [{transform_indices = @transform_0, window_bounds = array<i64: 128, 128>}, {pipeline_mode = #tpu.pipeline_mode<synchronous>, transform_indices = @transform_1, window_bounds = array<i64: 128, 512>}, {pipeline_mode = #tpu.pipeline_mode<synchronous>, transform_indices = @transform_2, window_bounds = array<i64: 1, 512>}, {pipeline_mode = #tpu.pipeline_mode<synchronous>, transform_indices = @transform_3, window_bounds = array<i64: 512, 128>}, {pipeline_mode = #tpu.pipeline_mode<synchronous>, transform_indices = @transform_4, window_bounds = array<i64: 1, 128>}, {transform_indices = @transform_5, window_bounds = array<i64: 128, 128>}]} {
    %c0 = arith.constant 0 : index
    %c0_0 = arith.constant 0 : index
    %0 = vector.load %arg1[%c0, %c0_0] : memref<128x128xf32, #tpu.memory_space<vmem>>, vector<128x128xf32>
    %c0_1 = arith.constant 0 : index
    %c0_2 = arith.constant 0 : index
    %1 = vector.load %arg5[%c0_1, %c0_2] : memref<1x128xf32, #tpu.memory_space<vmem>>, vector<1x128xf32>
    %2 = vector.shape_cast %1 : vector<1x128xf32> to vector<1x128xf32>
    %3 = vector.broadcast %2 : vector<1x128xf32> to vector<128x128xf32>
    %c0_3 = arith.constant 0 : index
    %c0_4 = arith.constant 0 : index
    %4 = vector.load %arg2[%c0_3, %c0_4] : memref<128x512xf32, #tpu.memory_space<vmem>>, vector<128x512xf32>
    %cst = arith.constant dense<0.000000e+00> : vector<128x512xf32>
    %5 = tpu.matmul %0, %4, %cst {dimension_numbers = #tpu.dot_dimension_numbers<[1], [0], [0], [1], [0, 0, 1, 1], [], []>} : vector<128x128xf32>, vector<128x512xf32>, vector<128x512xf32> -> vector<128x512xf32>
    %c0_5 = arith.constant 0 : index
    %c0_6 = arith.constant 0 : index
    %6 = vector.load %arg3[%c0_5, %c0_6] : memref<1x512xf32, #tpu.memory_space<vmem>>, vector<1x512xf32>
    %7 = vector.broadcast %6 : vector<1x512xf32> to vector<128x512xf32>
    %8 = arith.addf %5, %7 : vector<128x512xf32>
    %cst_7 = arith.constant 5.000000e-01 : f32
    %9 = vector.broadcast %cst_7 : f32 to vector<128x512xf32>
    %10 = arith.mulf %9, %8 : vector<128x512xf32>
    %cst_8 = arith.constant 4.471500e-02 : f32
    %11 = vector.broadcast %cst_8 : f32 to vector<128x512xf32>
    %12 = arith.mulf %11, %8 : vector<128x512xf32>
    %13 = arith.mulf %12, %8 : vector<128x512xf32>
    %14 = arith.mulf %13, %8 : vector<128x512xf32>
    %15 = arith.addf %8, %14 : vector<128x512xf32>
    %cst_9 = arith.constant 0.797884583 : f32
    %16 = vector.broadcast %cst_9 : f32 to vector<128x512xf32>
    %17 = arith.mulf %16, %15 : vector<128x512xf32>
    %18 = math.tanh %17 : vector<128x512xf32>
    %cst_10 = arith.constant 1.000000e+00 : f32
    %19 = vector.broadcast %cst_10 : f32 to vector<128x512xf32>
    %20 = arith.addf %19, %18 : vector<128x512xf32>
    %21 = arith.mulf %10, %20 : vector<128x512xf32>
    %c0_11 = arith.constant 0 : index
    %c0_12 = arith.constant 0 : index
    %22 = vector.load %arg4[%c0_11, %c0_12] : memref<512x128xf32, #tpu.memory_space<vmem>>, vector<512x128xf32>
    %cst_13 = arith.constant dense<0.000000e+00> : vector<128x128xf32>
    %23 = tpu.matmul %21, %22, %cst_13 {dimension_numbers = #tpu.dot_dimension_numbers<[1], [0], [0], [1], [0, 0, 1, 1], [], []>} : vector<128x512xf32>, vector<512x128xf32>, vector<128x128xf32> -> vector<128x128xf32>
    %24 = arith.addf %3, %23 : vector<128x128xf32>
    %c0_14 = arith.constant 0 : index
    %c0_15 = arith.constant 0 : index
    %25 = vector.load %arg6[%c0_14, %c0_15] : memref<128x128xf32, #tpu.memory_space<vmem>>, vector<128x128xf32>
    tpu.vector_store %arg6[%c0_14, %c0_15], %24 {strides = array<i32>} : memref<128x128xf32, #tpu.memory_space<vmem>>, vector<128x128xf32>,
    return
  }
  func.func @transform_0(%arg0: i32) -> (i32, i32) {
    %c0_i32 = arith.constant 0 : i32
    %c0_i32_0 = arith.constant 0 : i32
    return %arg0, %c0_i32 : i32, i32
  }
  func.func @transform_1(%arg0: i32) -> (i32, i32) {
    %c0_i32 = arith.constant 0 : i32
    %c0_i32_0 = arith.constant 0 : i32
    %c0_i32_1 = arith.constant 0 : i32
    return %c0_i32, %c0_i32_0 : i32, i32
  }
  func.func @transform_2(%arg0: i32) -> (i32, i32) {
    %c0_i32 = arith.constant 0 : i32
    %c0_i32_0 = arith.constant 0 : i32
    %c0_i32_1 = arith.constant 0 : i32
    return %c0_i32, %c0_i32_0 : i32, i32
  }
  func.func @transform_3(%arg0: i32) -> (i32, i32) {
    %c0_i32 = arith.constant 0 : i32
    %c0_i32_0 = arith.constant 0 : i32
    %c0_i32_1 = arith.constant 0 : i32
    return %c0_i32, %c0_i32_0 : i32, i32
  }
  func.func @transform_4(%arg0: i32) -> (i32, i32) {
    %c0_i32 = arith.constant 0 : i32
    %c0_i32_0 = arith.constant 0 : i32
    %c0_i32_1 = arith.constant 0 : i32
    return %c0_i32, %c0_i32_0 : i32, i32
  }
  func.func @transform_5(%arg0: i32) -> (i32, i32) {
    %c0_i32 = arith.constant 0 : i32
    %c0_i32_0 = arith.constant 0 : i32
    return %arg0, %c0_i32 : i32, i32
  }
}

</mosaic_0001>

<llo_original>
// kernel: tpu_custom_call.1
$region0: #{tpu_custom_call.1}
  #allocation0 [shape = 'u32[]', space=smem, size = 0x4, offset = 0x4, fixed_abs, tag = 'smem constant byte address 0x4 - core index']
  #allocation1 [shape = 'u32[72,128]{1,0:T(1,128)}', space=vmem, size = 0x9000, scoped, tag = 'internal scratch']
  %s0 = inlined_call_operand.hbm [shape: f32[256,128], index: 0, kind: input, shape index: {}]
  %s1 = inlined_call_operand.hbm [shape: f32[128,512], index: 1, kind: input, shape index: {}]
  %s2 = inlined_call_operand.hbm [shape: f32[1,512], index: 2, kind: input, shape index: {}]
  %s3 = inlined_call_operand.hbm [shape: f32[512,128], index: 3, kind: input, shape index: {}]
  %s4 = inlined_call_operand.vmem [shape: f32[1,128], index: 4, kind: input, shape index: {}]
  %s5 = inlined_call_operand.hbm [shape: f32[256,128], index: 5, kind: output, shape index: {}]
  %s6 = sld [smem:[#allocation0]]
  $region69: #{tpu_custom_call.1} parent=0
    _
  %s8 = ssub.s32 1, %s6
  %s9 = scalar_select 0, %s8, %s6
  $region1: #{tpu_custom_call.1} parent=0
    #allocation2 [shape = 'u8[131072]{0}', space=vmem, size = 0x20000, scoped, tag = 'input window, operand 0']
    #allocation3 [shape = 's32[2]{0}', space=sflag, size = 0x8, scoped, tag = 'scoped memory for tpu_custom_call.1']
    #allocation4 [shape = 's32[2]{0}', space=sflag, size = 0x8, scoped, tag = 'scoped memory for tpu_custom_call.1']
    #allocation5 [shape = 'u8[262144]{0}', space=vmem, size = 0x40000, scoped, tag = 'input window, operand 1, single buffered']
    #allocation6 [shape = 's32[1]{0}', space=sflag, size = 0x4, scoped, tag = 'scoped memory for tpu_custom_call.1']
    #allocation7 [shape = 'u8[2048]{0}', space=vmem, size = 0x800, scoped, tag = 'input window, operand 2, single buffered']
    #allocation8 [shape = 'u8[262144]{0}', space=vmem, size = 0x40000, scoped, tag = 'input window, operand 3, single buffered']
    #allocation9 [shape = 's32[1]{0}', space=sflag, size = 0x4, scoped, tag = 'scoped memory for tpu_custom_call.1']
    #allocation10 [shape = 'u8[131072]{0}', space=vmem, size = 0x20000, scoped, tag = 'output window, operand 0']
    %10 = vsyncpa [#allocation3], 0
    %s11 = scalar_lea.sflag [#allocation3], 1
    %12 = vsyncpa %s11, 0
    %13 = vsyncpa [#allocation6], 0
    %14 = vsyncpa [#allocation9], 0
    %15 = vsyncpa [#allocation4], 0
    %s16 = scalar_lea.sflag [#allocation4], 1
    %17 = vsyncpa %s16, 0
    loop: start=0, step=1, limit=4
    $region2: #{tpu_custom_call.1} parent=1 // loop_pre_header
      _
    $region3: #{tpu_custom_call.1} parent=1 // loop_header
      %s19 = sphi 0, %s23
      %p20 = scmp.ge.s32.totalorder %s19, 4
      %s29 = sphi 0, %s31
      %s32 = sphi 0, %s29
      %s33 = sphi 0, %s32
      %s49 = sphi 0, %s33
      %s53 = sphi 0, %s53
      %s55 = sphi 0, %s53
      %s56 = sphi 0, %s55
      %s70 = sphi 0, %s56
      %s74 = sphi 0, %s74
      %s76 = sphi 0, %s74
      %s77 = sphi 0, %s76
      %s91 = sphi 0, %s77
      %s95 = sphi 0, %s95
      %s97 = sphi 0, %s95
      %s98 = sphi 0, %s97
      %s112 = sphi 0, %s98
      %s116 = sphi 0, %s116
      %s118 = sphi 0, %s116
      %s119 = sphi 0, %s118
      %s133 = sphi 0, %s119
      %s139 = sphi 0, %s141
      %s142 = sphi 0, %s139
      %s143 = sphi 0, %s142
      %s159 = sphi 0, %s143
    $region4: #{tpu_custom_call.1} parent=1 // loop_header_branch
      %22 = sbr.rel (%p20) target = $region8
    $region5: #{tpu_custom_call.1} parent=1 // loop_body
      %s24 = ssub.s32 %s19, 1
      %s25 = ssub.s32 %s19, 2
      %s26 = sadd.s32 %s19, 1
      %s27 = ssub.s32 %s19, %s26
      %p28 = scmp.eq.s32.totalorder %s27, 0
      %s30 = sadd.s32 %s29, 1
      %s31 = scalar_select %p28, %s29, %s30
      %p34 = pneg %p28
      %p35 = scmp.eq.s32.totalorder %s19, 1
      %p36 = por %p34, %p35
      %p37 = scmp.ne.s32.totalorder %s29, %s32
      %p38 = scmp.eq.s32.totalorder %s19, 0
      %p39 = por %p37, %p38
      %p40 = scmp.ne.s32.totalorder %s29, %s32
      %p41 = scmp.eq.s32.totalorder %s24, 1
      %p42 = por %p40, %p41
      %p43 = scmp.ne.s32.totalorder %s32, %s33
      %p44 = scmp.eq.s32.totalorder %s24, 0
      %p45 = por %p43, %p44
      %p46 = scmp.ne.s32.totalorder %s32, %s33
      %p47 = scmp.eq.s32.totalorder %s25, 1
      %p48 = por %p46, %p47
      %p50 = scmp.ne.s32.totalorder %s33, %s49
      %p51 = scmp.eq.s32.totalorder %s25, 0
      %p52 = por %p50, %p51
      %s54 = sadd.s32 %s53, 1
      %p57 = scmp.eq.s32.totalorder %s19, 1
      %p58 = scmp.ne.s32.totalorder %s53, %s55
      %p59 = scmp.eq.s32.totalorder %s19, 0
      %p60 = por %p58, %p59
      %p61 = scmp.ne.s32.totalorder %s53, %s55
      %p62 = scmp.eq.s32.totalorder %s24, 1
      %p63 = por %p61, %p62
      %p64 = scmp.ne.s32.totalorder %s55, %s56
      %p65 = scmp.eq.s32.totalorder %s24, 0
      %p66 = por %p64, %p65
      %p67 = scmp.ne.s32.totalorder %s55, %s56
      %p68 = scmp.eq.s32.totalorder %s25, 1
      %p69 = por %p67, %p68
      %p71 = scmp.ne.s32.totalorder %s56, %s70
      %p72 = scmp.eq.s32.totalorder %s25, 0
      %p73 = por %p71, %p72
      %s75 = sadd.s32 %s74, 1
      %p78 = scmp.eq.s32.totalorder %s19, 1
      %p79 = scmp.ne.s32.totalorder %s74, %s76
      %p80 = scmp.eq.s32.totalorder %s19, 0
      %p81 = por %p79, %p80
      %p82 = scmp.ne.s32.totalorder %s74, %s76
      %p83 = scmp.eq.s32.totalorder %s24, 1
      %p84 = por %p82, %p83
      %p85 = scmp.ne.s32.totalorder %s76, %s77
      %p86 = scmp.eq.s32.totalorder %s24, 0
      %p87 = por %p85, %p86
      %p88 = scmp.ne.s32.totalorder %s76, %s77
      %p89 = scmp.eq.s32.totalorder %s25, 1
      %p90 = por %p88, %p89
      %p92 = scmp.ne.s32.totalorder %s77, %s91
      %p93 = scmp.eq.s32.totalorder %s25, 0
      %p94 = por %p92, %p93
      %s96 = sadd.s32 %s95, 1
      %p99 = scmp.eq.s32.totalorder %s19, 1
      %p100 = scmp.ne.s32.totalorder %s95, %s97
      %p101 = scmp.eq.s32.totalorder %s19, 0
      %p102 = por %p100, %p101
      %p103 = scmp.ne.s32.totalorder %s95, %s97
      %p104 = scmp.eq.s32.totalorder %s24, 1
      %p105 = por %p103, %p104
      %p106 = scmp.ne.s32.totalorder %s97, %s98
      %p107 = scmp.eq.s32.totalorder %s24, 0
      %p108 = por %p106, %p107
      %p109 = scmp.ne.s32.totalorder %s97, %s98
      %p110 = scmp.eq.s32.totalorder %s25, 1
      %p111 = por %p109, %p110
      %p113 = scmp.ne.s32.totalorder %s98, %s112
      %p114 = scmp.eq.s32.totalorder %s25, 0
      %p115 = por %p113, %p114
      %s117 = sadd.s32 %s116, 1
      %p120 = scmp.eq.s32.totalorder %s19, 1
      %p121 = scmp.ne.s32.totalorder %s116, %s118
      %p122 = scmp.eq.s32.totalorder %s19, 0
      %p123 = por %p121, %p122
      %p124 = scmp.ne.s32.totalorder %s116, %s118
      %p125 = scmp.eq.s32.totalorder %s24, 1
      %p126 = por %p124, %p125
      %p127 = scmp.ne.s32.totalorder %s118, %s119
      %p128 = scmp.eq.s32.totalorder %s24, 0
      %p129 = por %p127, %p128
      %p130 = scmp.ne.s32.totalorder %s118, %s119
      %p131 = scmp.eq.s32.totalorder %s25, 1
      %p132 = por %p130, %p131
      %p134 = scmp.ne.s32.totalorder %s119, %s133
      %p135 = scmp.eq.s32.totalorder %s25, 0
      %p136 = por %p134, %p135
      %s137 = ssub.s32 %s19, %s26
      %p138 = scmp.eq.s32.totalorder %s137, 0
      %s140 = sadd.s32 %s139, 1
      %s141 = scalar_select %p138, %s139, %s140
      %p144 = pneg %p138
      %p145 = scmp.eq.s32.totalorder %s19, 1
      %p146 = por %p144, %p145
      %p147 = scmp.ne.s32.totalorder %s139, %s142
      %p148 = scmp.eq.s32.totalorder %s19, 0
      %p149 = por %p147, %p148
      %p150 = scmp.ne.s32.totalorder %s139, %s142
      %p151 = scmp.eq.s32.totalorder %s24, 1
      %p152 = por %p150, %p151
      %p153 = scmp.ne.s32.totalorder %s142, %s143
      %p154 = scmp.eq.s32.totalorder %s24, 0
      %p155 = por %p153, %p154
      %p156 = scmp.ne.s32.totalorder %s142, %s143
      %p157 = scmp.eq.s32.totalorder %s25, 1
      %p158 = por %p156, %p157
      %p160 = scmp.ne.s32.totalorder %s143, %s159
      %p161 = scmp.eq.s32.totalorder %s25, 0
      %p162 = por %p160, %p161
      %p163 = scmp.le.s32.totalorder 1, %s19
      %p164 = scmp.lt.s32.totalorder %s19, 3
      %p165 = pnand %p163, %p164
      %p166 = pneg %p165
      // Predicated region
      $region9: #{tpu_custom_call.1} parent=5 // pred_check
        _
      $region10: #{tpu_custom_call.1} parent=5 // pred_check_branch
        %168 = sbr.rel (%p165) target = $region12
      $region11: #{tpu_custom_call.1} parent=5 // pred_region
        %s169 = ssub.s32 %s19, 1
        // Predicated region
        $region13: #{tpu_custom_call.1} parent=11 // pred_check
          %p170 = pneg %p66
        $region14: #{tpu_custom_call.1} parent=11 // pred_check_branch
          %172 = sbr.rel (%p170) target = $region16
        $region15: #{tpu_custom_call.1} parent=11 // pred_region
          %174 = vsyncadd [#allocation6], 0
          %s175 = sshll.u32 %s1, 4
          %s176 = int_to_ptr.hbm [resolvable:$true] %s175
          %s177 = sshll.u32 [#allocation5], 4
          %s178 = int_to_ptr.vmem [resolvable:$true] %s177
          %183 = dma.hbm_to_vmem [thread:$0]  %s176, 8192, %s178, [#allocation6], 512, 512, 32
        $region16: #{tpu_custom_call.1} parent=11 // pred_fallthru
          _
        // Predicated region
        $region17: #{tpu_custom_call.1} parent=11 // pred_check
          %p184 = pneg %p87
        $region18: #{tpu_custom_call.1} parent=11 // pred_check_branch
          %186 = sbr.rel (%p184) target = $region20
        $region19: #{tpu_custom_call.1} parent=11 // pred_region
          %188 = vsyncadd [#allocation6], 0
          %s190 = sshll.u32 %s2, 4
          %s191 = int_to_ptr.hbm [resolvable:$true] %s190
          %s192 = sshll.u32 [#allocation7], 4
          %s193 = int_to_ptr.vmem [resolvable:$true] %s192
          %195 = dma.hbm_to_vmem [thread:$0]  %s191, 64, %s193, [#allocation6]
        $region20: #{tpu_custom_call.1} parent=11 // pred_fallthru
          _
        // Predicated region
        $region21: #{tpu_custom_call.1} parent=11 // pred_check
          %p196 = pneg %p108
        $region22: #{tpu_custom_call.1} parent=11 // pred_check_branch
          %198 = sbr.rel (%p196) target = $region24
        $region23: #{tpu_custom_call.1} parent=11 // pred_region
          %200 = vsyncadd [#allocation9], 0
          %s201 = sshll.u32 %s3, 4
          %s202 = int_to_ptr.hbm [resolvable:$true] %s201
          %s203 = sshll.u32 [#allocation8], 4
          %s204 = int_to_ptr.vmem [resolvable:$true] %s203
          %209 = dma.hbm_to_vmem [thread:$0]  %s202, 8192, %s204, [#allocation9], 128, 128, 8
        $region24: #{tpu_custom_call.1} parent=11 // pred_fallthru
          _
        // Predicated region
        $region25: #{tpu_custom_call.1} parent=11 // pred_check
          %p210 = pneg %p129
        $region26: #{tpu_custom_call.1} parent=11 // pred_check_branch
          %212 = sbr.rel (%p210) target = $region28
        $region27: #{tpu_custom_call.1} parent=11 // pred_region
          _
        $region28: #{tpu_custom_call.1} parent=11 // pred_fallthru
          _
      $region12: #{tpu_custom_call.1} parent=5 // pred_fallthru
        _
      %p213 = scmp.lt.s32.totalorder %s19, 2
      // Predicated region
      $region29: #{tpu_custom_call.1} parent=5 // pred_check
        %p214 = pneg %p213
      $region30: #{tpu_custom_call.1} parent=5 // pred_check_branch
        %216 = sbr.rel (%p214) target = $region32
      $region31: #{tpu_custom_call.1} parent=5 // pred_region
        // Predicated region
        $region33: #{tpu_custom_call.1} parent=31 // pred_check
          %p217 = pneg %p39
        $region34: #{tpu_custom_call.1} parent=31 // pred_check_branch
          %219 = sbr.rel (%p217) target = $region36
        $region35: #{tpu_custom_call.1} parent=31 // pred_region
          %s220 = sand.u32 %s29, 1
          %s221 = scalar_lea.sflag [#allocation3], %s220
          %s222 = sand.u32 %s29, 1
          %s223 = smul.addr %s222, 128
          %s224 = scalar_lea.vmem [#allocation2], %s223
          %s225 = smul.u32 16, %s19
          %227 = vsyncadd %s221, 0
          %s228 = smul.addr %s225, 8
          %s229 = scalar_lea.hbm %s0, %s228
          %s230 = sshll.u32 %s229, 4
          %s231 = int_to_ptr.hbm [resolvable:$true] %s230
          %s232 = sshll.u32 %s224, 4
          %s233 = int_to_ptr.vmem [resolvable:$true] %s232
          %238 = dma.hbm_to_vmem [thread:$0]  %s231, 2048, %s233, %s221, 128, 128, 8
        $region36: #{tpu_custom_call.1} parent=31 // pred_fallthru
          _
      $region32: #{tpu_custom_call.1} parent=5 // pred_fallthru
        _
      %p239 = scmp.le.s32.totalorder 1, %s19
      %p240 = scmp.lt.s32.totalorder %s19, 3
      %p241 = pnand %p239, %p240
      %p242 = pneg %p241
      // Predicated region
      $region37: #{tpu_custom_call.1} parent=5 // pred_check
        _
      $region38: #{tpu_custom_call.1} parent=5 // pred_check_branch
        %244 = sbr.rel (%p241) target = $region40
      $region39: #{tpu_custom_call.1} parent=5 // pred_region
        %s245 = ssub.s32 %s19, 1
        %s246 = sand.u32 %s32, 1
        %s247 = scalar_lea.sflag [#allocation3], %s246
        %s248 = sand.u32 %s32, 1
        %s249 = smul.addr %s248, 128
        %s250 = scalar_lea.vmem [#allocation2], %s249
        // Predicated region
        $region41: #{tpu_custom_call.1} parent=39 // pred_check
          %p251 = pneg %p45
        $region42: #{tpu_custom_call.1} parent=39 // pred_check_branch
          %253 = sbr.rel (%p251) target = $region44
        $region43: #{tpu_custom_call.1} parent=39 // pred_region
          %255 = dma.done %s247, 2048
        $region44: #{tpu_custom_call.1} parent=39 // pred_fallthru
          _
        // Predicated region
        $region45: #{tpu_custom_call.1} parent=39 // pred_check
          %p256 = pneg %p66
        $region46: #{tpu_custom_call.1} parent=39 // pred_check_branch
          %258 = sbr.rel (%p256) target = $region48
        $region47: #{tpu_custom_call.1} parent=39 // pred_region
          %260 = dma.done [#allocation6], 8192
        $region48: #{tpu_custom_call.1} parent=39 // pred_fallthru
          _
        // Predicated region
        $region49: #{tpu_custom_call.1} parent=39 // pred_check
          %p261 = pneg %p87
        $region50: #{tpu_custom_call.1} parent=39 // pred_check_branch
          %263 = sbr.rel (%p261) target = $region52
        $region51: #{tpu_custom_call.1} parent=39 // pred_region
          %265 = dma.done [#allocation6], 64
        $region52: #{tpu_custom_call.1} parent=39 // pred_fallthru
          _
        // Predicated region
        $region53: #{tpu_custom_call.1} parent=39 // pred_check
          %p266 = pneg %p108
        $region54: #{tpu_custom_call.1} parent=39 // pred_check_branch
          %268 = sbr.rel (%p266) target = $region56
        $region55: #{tpu_custom_call.1} parent=39 // pred_region
          %270 = dma.done [#allocation9], 8192
        $region56: #{tpu_custom_call.1} parent=39 // pred_fallthru
          _
        %s271 = sand.u32 %s32, 1
        %s272 = scalar_lea.sflag [#allocation3], %s271
        %s273 = sand.u32 %s32, 1
        %s274 = smul.addr %s273, 128
        %s275 = scalar_lea.vmem [#allocation2], %s274
        %p276 = pneg %p45
        %p277 = pneg %p42
        %p278 = pneg %p66
        %p279 = pneg %p63
        %p280 = pneg %p87
        %p281 = pneg %p84
        %p282 = pneg %p108
        %p283 = pneg %p105
        %p284 = pneg %p129
        %p285 = pneg %p126
        %p286 = pneg %p155
        %p287 = pneg %p152
        %s288 = sand.u32 %s142, 1
        %s289 = scalar_lea.sflag [#allocation4], %s288
        %s290 = sand.u32 %s142, 1
        %s291 = smul.addr %s290, 128
        %s292 = scalar_lea.vmem [#allocation10], %s291
        %s293 = smul.u32 16, %s24
        %s294 = smul.u32 16, %s24
        %v295 = vld [vmem:[%s250] sm:$0xff]
        %v296 = vld [vmem:[%s250 + $0x8] sm:$0xff]
        %v297 = vld [vmem:[%s250 + $0x10] sm:$0xff]
        %v298 = vld [vmem:[%s250 + $0x18] sm:$0xff]
        %v299 = vld [vmem:[%s250 + $0x20] sm:$0xff]
        %v300 = vld [vmem:[%s250 + $0x28] sm:$0xff]
        %v301 = vld [vmem:[%s250 + $0x30] sm:$0xff]
        %v302 = vld [vmem:[%s250 + $0x38] sm:$0xff]
        %v303 = vld [vmem:[%s250 + $0x40] sm:$0xff]
        %v304 = vld [vmem:[%s250 + $0x48] sm:$0xff]
        %v305 = vld [vmem:[%s250 + $0x50] sm:$0xff]
        %v306 = vld [vmem:[%s250 + $0x58] sm:$0xff]
        %v307 = vld [vmem:[%s250 + $0x60] sm:$0xff]
        %v308 = vld [vmem:[%s250 + $0x68] sm:$0xff]
        %v309 = vld [vmem:[%s250 + $0x70] sm:$0xff]
        %v310 = vld [vmem:[%s250 + $0x78] sm:$0xff]
        %v311 = vld [vmem:[%s4] sm:$0x1]
        %v313 = vperm.slane %v311, 0
        %v315 = vld [vmem:[#allocation5] sm:$0xff]
        %v316 = vld [vmem:[#allocation5 + $0x8] sm:$0xff]
        %v317 = vld [vmem:[#allocation5 + $0x10] sm:$0xff]
        %v318 = vld [vmem:[#allocation5 + $0x18] sm:$0xff]
        %v319 = vld [vmem:[#allocation5 + $0x20] sm:$0xff]
        %v320 = vld [vmem:[#allocation5 + $0x28] sm:$0xff]
        %v321 = vld [vmem:[#allocation5 + $0x30] sm:$0xff]
        %v322 = vld [vmem:[#allocation5 + $0x38] sm:$0xff]
        %v323 = vld [vmem:[#allocation5 + $0x40] sm:$0xff]
        %v324 = vld [vmem:[#allocation5 + $0x48] sm:$0xff]
        %v325 = vld [vmem:[#allocation5 + $0x50] sm:$0xff]
        %v326 = vld [vmem:[#allocation5 + $0x58] sm:$0xff]
        %v327 = vld [vmem:[#allocation5 + $0x60] sm:$0xff]
        %v328 = vld [vmem:[#allocation5 + $0x68] sm:$0xff]
        %v329 = vld [vmem:[#allocation5 + $0x70] sm:$0xff]
        %v330 = vld [vmem:[#allocation5 + $0x78] sm:$0xff]
        %v331 = vld [vmem:[#allocation5 + $0x80] sm:$0xff]
        %v332 = vld [vmem:[#allocation5 + $0x88] sm:$0xff]
        %v333 = vld [vmem:[#allocation5 + $0x90] sm:$0xff]
        %v334 = vld [vmem:[#allocation5 + $0x98] sm:$0xff]
        %v335 = vld [vmem:[#allocation5 + $0xa0] sm:$0xff]
        %v336 = vld [vmem:[#allocation5 + $0xa8] sm:$0xff]
        %v337 = vld [vmem:[#allocation5 + $0xb0] sm:$0xff]
        %v338 = vld [vmem:[#allocation5 + $0xb8] sm:$0xff]
        %v339 = vld [vmem:[#allocation5 + $0xc0] sm:$0xff]
        %v340 = vld [vmem:[#allocation5 + $0xc8] sm:$0xff]
        %v341 = vld [vmem:[#allocation5 + $0xd0] sm:$0xff]
        %v342 = vld [vmem:[#allocation5 + $0xd8] sm:$0xff]
        %v343 = vld [vmem:[#allocation5 + $0xe0] sm:$0xff]
        %v344 = vld [vmem:[#allocation5 + $0xe8] sm:$0xff]
        %v345 = vld [vmem:[#allocation5 + $0xf0] sm:$0xff]
        %v346 = vld [vmem:[#allocation5 + $0xf8] sm:$0xff]
        %v347 = vld [vmem:[#allocation5 + $0x100] sm:$0xff]
        %v348 = vld [vmem:[#allocation5 + $0x108] sm:$0xff]
        %v349 = vld [vmem:[#allocation5 + $0x110] sm:$0xff]
        %v350 = vld [vmem:[#allocation5 + $0x118] sm:$0xff]
        %v351 = vld [vmem:[#allocation5 + $0x120] sm:$0xff]
        %v352 = vld [vmem:[#allocation5 + $0x128] sm:$0xff]
        %v353 = vld [vmem:[#allocation5 + $0x130] sm:$0xff]
        %v354 = vld [vmem:[#allocation5 + $0x138] sm:$0xff]
        %v355 = vld [vmem:[#allocation5 + $0x140] sm:$0xff]
        %v356 = vld [vmem:[#allocation5 + $0x148] sm:$0xff]
        %v357 = vld [vmem:[#allocation5 + $0x150] sm:$0xff]
        %v358 = vld [vmem:[#allocation5 + $0x158] sm:$0xff]
        %v359 = vld [vmem:[#allocation5 + $0x160] sm:$0xff]
        %v360 = vld [vmem:[#allocation5 + $0x168] sm:$0xff]
        %v361 = vld [vmem:[#allocation5 + $0x170] sm:$0xff]
        %v362 = vld [vmem:[#allocation5 + $0x178] sm:$0xff]
        %v363 = vld [vmem:[#allocation5 + $0x180] sm:$0xff]
        %v364 = vld [vmem:[#allocation5 + $0x188] sm:$0xff]
        %v365 = vld [vmem:[#allocation5 + $0x190] sm:$0xff]
        %v366 = vld [vmem:[#allocation5 + $0x198] sm:$0xff]
        %v367 = vld [vmem:[#allocation5 + $0x1a0] sm:$0xff]
        %v368 = vld [vmem:[#allocation5 + $0x1a8] sm:$0xff]
        %v369 = vld [vmem:[#allocation5 + $0x1b0] sm:$0xff]
        %v370 = vld [vmem:[#allocation5 + $0x1b8] sm:$0xff]
        %v371 = vld [vmem:[#allocation5 + $0x1c0] sm:$0xff]
        %v372 = vld [vmem:[#allocation5 + $0x1c8] sm:$0xff]
        %v373 = vld [vmem:[#allocation5 + $0x1d0] sm:$0xff]
        %v374 = vld [vmem:[#allocation5 + $0x1d8] sm:$0xff]
        %v375 = vld [vmem:[#allocation5 + $0x1e0] sm:$0xff]
        %v376 = vld [vmem:[#allocation5 + $0x1e8] sm:$0xff]
        %v377 = vld [vmem:[#allocation5 + $0x1f0] sm:$0xff]
        %v378 = vld [vmem:[#allocation5 + $0x1f8] sm:$0xff]
        %v379 = vld [vmem:[#allocation7] sm:$0xf]
        %v381 = vperm.slane %v379, 0
        %v382 = vperm.slane %v379, 1
        %v383 = vperm.slane %v379, 2
        %v384 = vperm.slane %v379, 3
        %389 = vmatpush.msra.mxu0 %v375
        %390 = vmatpush.msra.mxu0 %v371
        %391 = vmatpush.msra.mxu0 %v367
        %392 = vmatpush.msra.mxu0 %v363
        %393 = vmatpush.msra.mxu0 %v359
        %394 = vmatpush.msra.mxu0 %v355
        %395 = vmatpush.msra.mxu0 %v351
        %396 = vmatpush.msra.mxu0 %v347
        %397 = vmatpush.msra.mxu0 %v343
        %398 = vmatpush.msra.mxu0 %v339
        %399 = vmatpush.msra.mxu0 %v335
        %400 = vmatpush.msra.mxu0 %v331
        %401 = vmatpush.msra.mxu0 %v327
        %402 = vmatpush.msra.mxu0 %v323
        %403 = vmatpush.msra.mxu0 %v319
        %404 = vmatpush.msra.mxu0 %v315
        %405 = vmatmul.f32.gmra.mxu0 %v295
        %v406 = vpop.f32.mrf.mxu0
        %v407 = vadd.f32 %v381, %v406
        %408 = vmatmul.f32.gmra.mxu0 %v296
        %v409 = vpop.f32.mrf.mxu0
        %v410 = vadd.f32 %v381, %v409
        %411 = vmatmul.f32.gmra.mxu0 %v297
        %v412 = vpop.f32.mrf.mxu0
        %v413 = vadd.f32 %v381, %v412
        %414 = vmatmul.f32.gmra.mxu0 %v298
        %v415 = vpop.f32.mrf.mxu0
        %v416 = vadd.f32 %v381, %v415
        %417 = vmatmul.f32.gmra.mxu0 %v299
        %v418 = vpop.f32.mrf.mxu0
        %v419 = vadd.f32 %v381, %v418
        %420 = vmatmul.f32.gmra.mxu0 %v300
        %v421 = vpop.f32.mrf.mxu0
        %v422 = vadd.f32 %v381, %v421
        %423 = vmatmul.f32.gmra.mxu0 %v301
        %v424 = vpop.f32.mrf.mxu0
        %v425 = vadd.f32 %v381, %v424
        %426 = vmatmul.f32.gmra.mxu0 %v302
        %v427 = vpop.f32.mrf.mxu0
        %v428 = vadd.f32 %v381, %v427
        %429 = vmatmul.f32.gmra.mxu0 %v303
        %v430 = vpop.f32.mrf.mxu0
        %v431 = vadd.f32 %v381, %v430
        %432 = vmatmul.f32.gmra.mxu0 %v304
        %v433 = vpop.f32.mrf.mxu0
        %v434 = vadd.f32 %v381, %v433
        %435 = vmatmul.f32.gmra.mxu0 %v305
        %v436 = vpop.f32.mrf.mxu0
        %v437 = vadd.f32 %v381, %v436
        %438 = vmatmul.f32.gmra.mxu0 %v306
        %v439 = vpop.f32.mrf.mxu0
        %v440 = vadd.f32 %v381, %v439
        %441 = vmatmul.f32.gmra.mxu0 %v307
        %v442 = vpop.f32.mrf.mxu0
        %v443 = vadd.f32 %v381, %v442
        %444 = vmatmul.f32.gmra.mxu0 %v308
        %v445 = vpop.f32.mrf.mxu0
        %v446 = vadd.f32 %v381, %v445
        %447 = vmatmul.f32.gmra.mxu0 %v309
        %v448 = vpop.f32.mrf.mxu0
        %v449 = vadd.f32 %v381, %v448
        %450 = vmatmul.f32.gmra.mxu0 %v310
        %v451 = vpop.f32.mrf.mxu0
        %v452 = vadd.f32 %v381, %v451
        %453 = vdwg.mxu0
        %454 = vmatpush.msra.mxu0 %v376
        %455 = vmatpush.msra.mxu0 %v372
        %456 = vmatpush.msra.mxu0 %v368
        %457 = vmatpush.msra.mxu0 %v364
        %458 = vmatpush.msra.mxu0 %v360
        %459 = vmatpush.msra.mxu0 %v356
        %460 = vmatpush.msra.mxu0 %v352
        %461 = vmatpush.msra.mxu0 %v348
        %462 = vmatpush.msra.mxu0 %v344
        %463 = vmatpush.msra.mxu0 %v340
        %464 = vmatpush.msra.mxu0 %v336
        %465 = vmatpush.msra.mxu0 %v332
        %466 = vmatpush.msra.mxu0 %v328
        %467 = vmatpush.msra.mxu0 %v324
        %468 = vmatpush.msra.mxu0 %v320
        %469 = vmatpush.msra.mxu0 %v316
        %470 = vmatmul.f32.gmra.mxu0 %v295
        %v471 = vpop.f32.mrf.mxu0
        %v472 = vadd.f32 %v382, %v471
        %473 = vmatmul.f32.gmra.mxu0 %v296
        %v474 = vpop.f32.mrf.mxu0
        %v475 = vadd.f32 %v382, %v474
        %476 = vmatmul.f32.gmra.mxu0 %v297
        %v477 = vpop.f32.mrf.mxu0
        %v478 = vadd.f32 %v382, %v477
        %479 = vmatmul.f32.gmra.mxu0 %v298
        %v480 = vpop.f32.mrf.mxu0
        %v481 = vadd.f32 %v382, %v480
        %482 = vmatmul.f32.gmra.mxu0 %v299
        %v483 = vpop.f32.mrf.mxu0
        %v484 = vadd.f32 %v382, %v483
        %485 = vmatmul.f32.gmra.mxu0 %v300
        %v486 = vpop.f32.mrf.mxu0
        %v487 = vadd.f32 %v382, %v486
        %488 = vmatmul.f32.gmra.mxu0 %v301
        %v489 = vpop.f32.mrf.mxu0
        %v490 = vadd.f32 %v382, %v489
        %491 = vmatmul.f32.gmra.mxu0 %v302
        %v492 = vpop.f32.mrf.mxu0
        %v493 = vadd.f32 %v382, %v492
        %494 = vmatmul.f32.gmra.mxu0 %v303
        %v495 = vpop.f32.mrf.mxu0
        %v496 = vadd.f32 %v382, %v495
        %497 = vmatmul.f32.gmra.mxu0 %v304
        %v498 = vpop.f32.mrf.mxu0
        %v499 = vadd.f32 %v382, %v498
        %500 = vmatmul.f32.gmra.mxu0 %v305
        %v501 = vpop.f32.mrf.mxu0
        %v502 = vadd.f32 %v382, %v501
        %503 = vmatmul.f32.gmra.mxu0 %v306
        %v504 = vpop.f32.mrf.mxu0
        %v505 = vadd.f32 %v382, %v504
        %506 = vmatmul.f32.gmra.mxu0 %v307
        %v507 = vpop.f32.mrf.mxu0
        %v508 = vadd.f32 %v382, %v507
        %509 = vmatmul.f32.gmra.mxu0 %v308
        %v510 = vpop.f32.mrf.mxu0
        %v511 = vadd.f32 %v382, %v510
        %512 = vmatmul.f32.gmra.mxu0 %v309
        %v513 = vpop.f32.mrf.mxu0
        %v514 = vadd.f32 %v382, %v513
        %515 = vmatmul.f32.gmra.mxu0 %v310
        %v516 = vpop.f32.mrf.mxu0
        %v517 = vadd.f32 %v382, %v516
        %518 = vdwg.mxu0
        %519 = vmatpush.msra.mxu0 %v377
        %520 = vmatpush.msra.mxu0 %v373
        %521 = vmatpush.msra.mxu0 %v369
        %522 = vmatpush.msra.mxu0 %v365
        %523 = vmatpush.msra.mxu0 %v361
        %524 = vmatpush.msra.mxu0 %v357
        %525 = vmatpush.msra.mxu0 %v353
        %526 = vmatpush.msra.mxu0 %v349
        %527 = vmatpush.msra.mxu0 %v345
        %528 = vmatpush.msra.mxu0 %v341
        %529 = vmatpush.msra.mxu0 %v337
        %530 = vmatpush.msra.mxu0 %v333
        %531 = vmatpush.msra.mxu0 %v329
        %532 = vmatpush.msra.mxu0 %v325
        %533 = vmatpush.msra.mxu0 %v321
        %534 = vmatpush.msra.mxu0 %v317
        %535 = vmatmul.f32.gmra.mxu0 %v295
        %v536 = vpop.f32.mrf.mxu0
        %v537 = vadd.f32 %v383, %v536
        %538 = vmatmul.f32.gmra.mxu0 %v296
        %v539 = vpop.f32.mrf.mxu0
        %v540 = vadd.f32 %v383, %v539
        %541 = vmatmul.f32.gmra.mxu0 %v297
        %v542 = vpop.f32.mrf.mxu0
        %v543 = vadd.f32 %v383, %v542
        %544 = vmatmul.f32.gmra.mxu0 %v298
        %v545 = vpop.f32.mrf.mxu0
        %v546 = vadd.f32 %v383, %v545
        %547 = vmatmul.f32.gmra.mxu0 %v299
        %v548 = vpop.f32.mrf.mxu0
        %v549 = vadd.f32 %v383, %v548
        %550 = vmatmul.f32.gmra.mxu0 %v300
        %v551 = vpop.f32.mrf.mxu0
        %v552 = vadd.f32 %v383, %v551
        %553 = vmatmul.f32.gmra.mxu0 %v301
        %v554 = vpop.f32.mrf.mxu0
        %v555 = vadd.f32 %v383, %v554
        %556 = vmatmul.f32.gmra.mxu0 %v302
        %v557 = vpop.f32.mrf.mxu0
        %v558 = vadd.f32 %v383, %v557
        %559 = vmatmul.f32.gmra.mxu0 %v303
        %v560 = vpop.f32.mrf.mxu0
        %v561 = vadd.f32 %v383, %v560
        %562 = vmatmul.f32.gmra.mxu0 %v304
        %v563 = vpop.f32.mrf.mxu0
        %v564 = vadd.f32 %v383, %v563
        %565 = vmatmul.f32.gmra.mxu0 %v305
        %v566 = vpop.f32.mrf.mxu0
        %v567 = vadd.f32 %v383, %v566
        %568 = vmatmul.f32.gmra.mxu0 %v306
        %v569 = vpop.f32.mrf.mxu0
        %v570 = vadd.f32 %v383, %v569
        %571 = vmatmul.f32.gmra.mxu0 %v307
        %v572 = vpop.f32.mrf.mxu0
        %v573 = vadd.f32 %v383, %v572
        %574 = vmatmul.f32.gmra.mxu0 %v308
        %v575 = vpop.f32.mrf.mxu0
        %v576 = vadd.f32 %v383, %v575
        %577 = vmatmul.f32.gmra.mxu0 %v309
        %v578 = vpop.f32.mrf.mxu0
        %v579 = vadd.f32 %v383, %v578
        %580 = vmatmul.f32.gmra.mxu0 %v310
        %v581 = vpop.f32.mrf.mxu0
        %v582 = vadd.f32 %v383, %v581
        %583 = vdwg.mxu0
        %584 = vmatpush.msra.mxu0 %v378
        %585 = vmatpush.msra.mxu0 %v374
        %586 = vmatpush.msra.mxu0 %v370
        %587 = vmatpush.msra.mxu0 %v366
        %588 = vmatpush.msra.mxu0 %v362
        %589 = vmatpush.msra.mxu0 %v358
        %590 = vmatpush.msra.mxu0 %v354
        %591 = vmatpush.msra.mxu0 %v350
        %592 = vmatpush.msra.mxu0 %v346
        %593 = vmatpush.msra.mxu0 %v342
        %594 = vmatpush.msra.mxu0 %v338
        %595 = vmatpush.msra.mxu0 %v334
        %596 = vmatpush.msra.mxu0 %v330
        %597 = vmatpush.msra.mxu0 %v326
        %598 = vmatpush.msra.mxu0 %v322
        %599 = vmatpush.msra.mxu0 %v318
        %600 = vmatmul.f32.gmra.mxu0 %v295
        %v601 = vpop.f32.mrf.mxu0
        %v602 = vadd.f32 %v384, %v601
        %603 = vmatmul.f32.gmra.mxu0 %v296
        %v604 = vpop.f32.mrf.mxu0
        %v605 = vadd.f32 %v384, %v604
        %606 = vmatmul.f32.gmra.mxu0 %v297
        %v607 = vpop.f32.mrf.mxu0
        %v608 = vadd.f32 %v384, %v607
        %609 = vmatmul.f32.gmra.mxu0 %v298
        %v610 = vpop.f32.mrf.mxu0
        %v611 = vadd.f32 %v384, %v610
        %612 = vmatmul.f32.gmra.mxu0 %v299
        %v613 = vpop.f32.mrf.mxu0
        %v614 = vadd.f32 %v384, %v613
        %615 = vmatmul.f32.gmra.mxu0 %v300
        %v616 = vpop.f32.mrf.mxu0
        %v617 = vadd.f32 %v384, %v616
        %618 = vmatmul.f32.gmra.mxu0 %v301
        %v619 = vpop.f32.mrf.mxu0
        %v620 = vadd.f32 %v384, %v619
        %621 = vmatmul.f32.gmra.mxu0 %v302
        %v622 = vpop.f32.mrf.mxu0
        %v623 = vadd.f32 %v384, %v622
        %624 = vmatmul.f32.gmra.mxu0 %v303
        %v625 = vpop.f32.mrf.mxu0
        %v626 = vadd.f32 %v384, %v625
        %627 = vmatmul.f32.gmra.mxu0 %v304
        %v628 = vpop.f32.mrf.mxu0
        %v629 = vadd.f32 %v384, %v628
        %630 = vmatmul.f32.gmra.mxu0 %v305
        %v631 = vpop.f32.mrf.mxu0
        %v632 = vadd.f32 %v384, %v631
        %633 = vmatmul.f32.gmra.mxu0 %v306
        %v634 = vpop.f32.mrf.mxu0
        %v635 = vadd.f32 %v384, %v634
        %636 = vmatmul.f32.gmra.mxu0 %v307
        %v637 = vpop.f32.mrf.mxu0
        %v638 = vadd.f32 %v384, %v637
        %639 = vmatmul.f32.gmra.mxu0 %v308
        %v640 = vpop.f32.mrf.mxu0
        %v641 = vadd.f32 %v384, %v640
        %642 = vmatmul.f32.gmra.mxu0 %v309
        %v643 = vpop.f32.mrf.mxu0
        %v644 = vadd.f32 %v384, %v643
        %645 = vmatmul.f32.gmra.mxu0 %v310
        %v646 = vpop.f32.mrf.mxu0
        %v647 = vadd.f32 %v384, %v646
        %648 = vdwg.mxu0
        %v649 = vmul.f32 %v407, 0.5
        %v650 = vmul.f32 %v472, 0.5
        %v651 = vmul.f32 %v537, 0.5
        %v652 = vmul.f32 %v602, 0.5
        %v653 = vmul.f32 %v410, 0.5
        %v654 = vmul.f32 %v475, 0.5
        %v655 = vmul.f32 %v540, 0.5
        %v656 = vmul.f32 %v605, 0.5
        %v657 = vmul.f32 %v413, 0.5
        %v658 = vmul.f32 %v478, 0.5
        %v659 = vmul.f32 %v543, 0.5
        %v660 = vmul.f32 %v608, 0.5
        %v661 = vmul.f32 %v416, 0.5
        %v662 = vmul.f32 %v481, 0.5
        %v663 = vmul.f32 %v546, 0.5
        %v664 = vmul.f32 %v611, 0.5
        %v665 = vmul.f32 %v419, 0.5
        %v666 = vmul.f32 %v484, 0.5
        %v667 = vmul.f32 %v549, 0.5
        %v668 = vmul.f32 %v614, 0.5
        %v669 = vmul.f32 %v422, 0.5
        %v670 = vmul.f32 %v487, 0.5
        %v671 = vmul.f32 %v552, 0.5
        %v672 = vmul.f32 %v617, 0.5
        %v673 = vmul.f32 %v425, 0.5
        %v674 = vmul.f32 %v490, 0.5
        %v675 = vmul.f32 %v555, 0.5
        %v676 = vmul.f32 %v620, 0.5
        %v677 = vmul.f32 %v428, 0.5
        %v678 = vmul.f32 %v493, 0.5
        %v679 = vmul.f32 %v558, 0.5
        %v680 = vmul.f32 %v623, 0.5
        %v681 = vmul.f32 %v431, 0.5
        %v682 = vmul.f32 %v496, 0.5
        %v683 = vmul.f32 %v561, 0.5
        %v684 = vmul.f32 %v626, 0.5
        %v685 = vmul.f32 %v434, 0.5
        %v686 = vmul.f32 %v499, 0.5
        %v687 = vmul.f32 %v564, 0.5
        %v688 = vmul.f32 %v629, 0.5
        %v689 = vmul.f32 %v437, 0.5
        %v690 = vmul.f32 %v502, 0.5
        %v691 = vmul.f32 %v567, 0.5
        %v692 = vmul.f32 %v632, 0.5
        %v693 = vmul.f32 %v440, 0.5
        %v694 = vmul.f32 %v505, 0.5
        %v695 = vmul.f32 %v570, 0.5
        %v696 = vmul.f32 %v635, 0.5
        %v697 = vmul.f32 %v443, 0.5
        %v698 = vmul.f32 %v508, 0.5
        %v699 = vmul.f32 %v573, 0.5
        %v700 = vmul.f32 %v638, 0.5
        %v701 = vmul.f32 %v446, 0.5
        %v702 = vmul.f32 %v511, 0.5
        %v703 = vmul.f32 %v576, 0.5
        %v704 = vmul.f32 %v641, 0.5
        %v705 = vmul.f32 %v449, 0.5
        %v706 = vmul.f32 %v514, 0.5
        %v707 = vmul.f32 %v579, 0.5
        %v708 = vmul.f32 %v644, 0.5
        %v709 = vmul.f32 %v452, 0.5
        %v710 = vmul.f32 %v517, 0.5
        %v711 = vmul.f32 %v582, 0.5
        %v712 = vmul.f32 %v647, 0.5
        %v713 = vmul.f32 %v407, 0.044715
        %v714 = vmul.f32 %v472, 0.044715
        %v715 = vmul.f32 %v537, 0.044715
        %v716 = vmul.f32 %v602, 0.044715
        %v717 = vmul.f32 %v410, 0.044715
        %v718 = vmul.f32 %v475, 0.044715
        %v719 = vmul.f32 %v540, 0.044715
        %v720 = vmul.f32 %v605, 0.044715
        %v721 = vmul.f32 %v413, 0.044715
        %v722 = vmul.f32 %v478, 0.044715
        %v723 = vmul.f32 %v543, 0.044715
        %v724 = vmul.f32 %v608, 0.044715
        %v725 = vmul.f32 %v416, 0.044715
        %v726 = vmul.f32 %v481, 0.044715
        %v727 = vmul.f32 %v546, 0.044715
        %v728 = vmul.f32 %v611, 0.044715
        %v729 = vmul.f32 %v419, 0.044715
        %v730 = vmul.f32 %v484, 0.044715
        %v731 = vmul.f32 %v549, 0.044715
        %v732 = vmul.f32 %v614, 0.044715
        %v733 = vmul.f32 %v422, 0.044715
        %v734 = vmul.f32 %v487, 0.044715
        %v735 = vmul.f32 %v552, 0.044715
        %v736 = vmul.f32 %v617, 0.044715
        %v737 = vmul.f32 %v425, 0.044715
        %v738 = vmul.f32 %v490, 0.044715
        %v739 = vmul.f32 %v555, 0.044715
        %v740 = vmul.f32 %v620, 0.044715
        %v741 = vmul.f32 %v428, 0.044715
        %v742 = vmul.f32 %v493, 0.044715
        %v743 = vmul.f32 %v558, 0.044715
        %v744 = vmul.f32 %v623, 0.044715
        %v745 = vmul.f32 %v431, 0.044715
        %v746 = vmul.f32 %v496, 0.044715
        %v747 = vmul.f32 %v561, 0.044715
        %v748 = vmul.f32 %v626, 0.044715
        %v749 = vmul.f32 %v434, 0.044715
        %v750 = vmul.f32 %v499, 0.044715
        %v751 = vmul.f32 %v564, 0.044715
        %v752 = vmul.f32 %v629, 0.044715
        %v753 = vmul.f32 %v437, 0.044715
        %v754 = vmul.f32 %v502, 0.044715
        %v755 = vmul.f32 %v567, 0.044715
        %v756 = vmul.f32 %v632, 0.044715
        %v757 = vmul.f32 %v440, 0.044715
        %v758 = vmul.f32 %v505, 0.044715
        %v759 = vmul.f32 %v570, 0.044715
        %v760 = vmul.f32 %v635, 0.044715
        %v761 = vmul.f32 %v443, 0.044715
        %v762 = vmul.f32 %v508, 0.044715
        %v763 = vmul.f32 %v573, 0.044715
        %v764 = vmul.f32 %v638, 0.044715
        %v765 = vmul.f32 %v446, 0.044715
        %v766 = vmul.f32 %v511, 0.044715
        %v767 = vmul.f32 %v576, 0.044715
        %v768 = vmul.f32 %v641, 0.044715
        %v769 = vmul.f32 %v449, 0.044715
        %v770 = vmul.f32 %v514, 0.044715
        %v771 = vmul.f32 %v579, 0.044715
        %v772 = vmul.f32 %v644, 0.044715
        %v773 = vmul.f32 %v452, 0.044715
        %v774 = vmul.f32 %v517, 0.044715
        %v775 = vmul.f32 %v582, 0.044715
        %v776 = vmul.f32 %v647, 0.044715
        %v777 = vmul.f32 %v713, %v407
        %v778 = vmul.f32 %v714, %v472
        %v779 = vmul.f32 %v715, %v537
        %v780 = vmul.f32 %v716, %v602
        %v781 = vmul.f32 %v717, %v410
        %v782 = vmul.f32 %v718, %v475
        %v783 = vmul.f32 %v719, %v540
        %v784 = vmul.f32 %v720, %v605
        %v785 = vmul.f32 %v721, %v413
        %v786 = vmul.f32 %v722, %v478
        %v787 = vmul.f32 %v723, %v543
        %v788 = vmul.f32 %v724, %v608
        %v789 = vmul.f32 %v725, %v416
        %v790 = vmul.f32 %v726, %v481
        %v791 = vmul.f32 %v727, %v546
        %v792 = vmul.f32 %v728, %v611
        %v793 = vmul.f32 %v729, %v419
        %v794 = vmul.f32 %v730, %v484
        %v795 = vmul.f32 %v731, %v549
        %v796 = vmul.f32 %v732, %v614
        %v797 = vmul.f32 %v733, %v422
        %v798 = vmul.f32 %v734, %v487
        %v799 = vmul.f32 %v735, %v552
        %v800 = vmul.f32 %v736, %v617
        %v801 = vmul.f32 %v737, %v425
        %v802 = vmul.f32 %v738, %v490
        %v803 = vmul.f32 %v739, %v555
        %v804 = vmul.f32 %v740, %v620
        %v805 = vmul.f32 %v741, %v428
        %v806 = vmul.f32 %v742, %v493
        %v807 = vmul.f32 %v743, %v558
        %v808 = vmul.f32 %v744, %v623
        %v809 = vmul.f32 %v745, %v431
        %v810 = vmul.f32 %v746, %v496
        %v811 = vmul.f32 %v747, %v561
        %v812 = vmul.f32 %v748, %v626
        %v813 = vmul.f32 %v749, %v434
        %v814 = vmul.f32 %v750, %v499
        %v815 = vmul.f32 %v751, %v564
        %v816 = vmul.f32 %v752, %v629
        %v817 = vmul.f32 %v753, %v437
        %v818 = vmul.f32 %v754, %v502
        %v819 = vmul.f32 %v755, %v567
        %v820 = vmul.f32 %v756, %v632
        %v821 = vmul.f32 %v757, %v440
        %v822 = vmul.f32 %v758, %v505
        %v823 = vmul.f32 %v759, %v570
        %v824 = vmul.f32 %v760, %v635
        %v825 = vmul.f32 %v761, %v443
        %v826 = vmul.f32 %v762, %v508
        %v827 = vmul.f32 %v763, %v573
        %v828 = vmul.f32 %v764, %v638
        %v829 = vmul.f32 %v765, %v446
        %v830 = vmul.f32 %v766, %v511
        %v831 = vmul.f32 %v767, %v576
        %v832 = vmul.f32 %v768, %v641
        %v833 = vmul.f32 %v769, %v449
        %v834 = vmul.f32 %v770, %v514
        %v835 = vmul.f32 %v771, %v579
        %v836 = vmul.f32 %v772, %v644
        %v837 = vmul.f32 %v773, %v452
        %v838 = vmul.f32 %v774, %v517
        %v839 = vmul.f32 %v775, %v582
        %v840 = vmul.f32 %v776, %v647
        %v841 = vmul.f32 %v777, %v407
        %v842 = vmul.f32 %v778, %v472
        %v843 = vmul.f32 %v779, %v537
        %v844 = vmul.f32 %v780, %v602
        %v845 = vmul.f32 %v781, %v410
        %v846 = vmul.f32 %v782, %v475
        %v847 = vmul.f32 %v783, %v540
        %v848 = vmul.f32 %v784, %v605
        %v849 = vmul.f32 %v785, %v413
        %v850 = vmul.f32 %v786, %v478
        %v851 = vmul.f32 %v787, %v543
        %v852 = vmul.f32 %v788, %v608
        %v853 = vmul.f32 %v789, %v416
        %v854 = vmul.f32 %v790, %v481
        %v855 = vmul.f32 %v791, %v546
        %v856 = vmul.f32 %v792, %v611
        %v857 = vmul.f32 %v793, %v419
        %v858 = vmul.f32 %v794, %v484
        %v859 = vmul.f32 %v795, %v549
        %v860 = vmul.f32 %v796, %v614
        %v861 = vmul.f32 %v797, %v422
        %v862 = vmul.f32 %v798, %v487
        %v863 = vmul.f32 %v799, %v552
        %v864 = vmul.f32 %v800, %v617
        %v865 = vmul.f32 %v801, %v425
        %v866 = vmul.f32 %v802, %v490
        %v867 = vmul.f32 %v803, %v555
        %v868 = vmul.f32 %v804, %v620
        %v869 = vmul.f32 %v805, %v428
        %v870 = vmul.f32 %v806, %v493
        %v871 = vmul.f32 %v807, %v558
        %v872 = vmul.f32 %v808, %v623
        %v873 = vmul.f32 %v809, %v431
        %v874 = vmul.f32 %v810, %v496
        %v875 = vmul.f32 %v811, %v561
        %v876 = vmul.f32 %v812, %v626
        %v877 = vmul.f32 %v813, %v434
        %v878 = vmul.f32 %v814, %v499
        %v879 = vmul.f32 %v815, %v564
        %v880 = vmul.f32 %v816, %v629
        %v881 = vmul.f32 %v817, %v437
        %v882 = vmul.f32 %v818, %v502
        %v883 = vmul.f32 %v819, %v567
        %v884 = vmul.f32 %v820, %v632
        %v885 = vmul.f32 %v821, %v440
        %v886 = vmul.f32 %v822, %v505
        %v887 = vmul.f32 %v823, %v570
        %v888 = vmul.f32 %v824, %v635
        %v889 = vmul.f32 %v825, %v443
        %v890 = vmul.f32 %v826, %v508
        %v891 = vmul.f32 %v827, %v573
        %v892 = vmul.f32 %v828, %v638
        %v893 = vmul.f32 %v829, %v446
        %v894 = vmul.f32 %v830, %v511
        %v895 = vmul.f32 %v831, %v576
        %v896 = vmul.f32 %v832, %v641
        %v897 = vmul.f32 %v833, %v449
        %v898 = vmul.f32 %v834, %v514
        %v899 = vmul.f32 %v835, %v579
        %v900 = vmul.f32 %v836, %v644
        %v901 = vmul.f32 %v837, %v452
        %v902 = vmul.f32 %v838, %v517
        %v903 = vmul.f32 %v839, %v582
        %v904 = vmul.f32 %v840, %v647
        %v905 = vadd.f32 %v407, %v841
        %v906 = vadd.f32 %v472, %v842
        %v907 = vadd.f32 %v537, %v843
        %v908 = vadd.f32 %v602, %v844
        %v909 = vadd.f32 %v410, %v845
        %v910 = vadd.f32 %v475, %v846
        %v911 = vadd.f32 %v540, %v847
        %v912 = vadd.f32 %v605, %v848
        %v913 = vadd.f32 %v413, %v849
        %v914 = vadd.f32 %v478, %v850
        %v915 = vadd.f32 %v543, %v851
        %v916 = vadd.f32 %v608, %v852
        %v917 = vadd.f32 %v416, %v853
        %v918 = vadd.f32 %v481, %v854
        %v919 = vadd.f32 %v546, %v855
        %v920 = vadd.f32 %v611, %v856
        %v921 = vadd.f32 %v419, %v857
        %v922 = vadd.f32 %v484, %v858
        %v923 = vadd.f32 %v549, %v859
        %v924 = vadd.f32 %v614, %v860
        %v925 = vadd.f32 %v422, %v861
        %v926 = vadd.f32 %v487, %v862
        %v927 = vadd.f32 %v552, %v863
        %v928 = vadd.f32 %v617, %v864
        %v929 = vadd.f32 %v425, %v865
        %v930 = vadd.f32 %v490, %v866
        %v931 = vadd.f32 %v555, %v867
        %v932 = vadd.f32 %v620, %v868
        %v933 = vadd.f32 %v428, %v869
        %v934 = vadd.f32 %v493, %v870
        %v935 = vadd.f32 %v558, %v871
        %v936 = vadd.f32 %v623, %v872
        %v937 = vadd.f32 %v431, %v873
        %v938 = vadd.f32 %v496, %v874
        %v939 = vadd.f32 %v561, %v875
        %v940 = vadd.f32 %v626, %v876
        %v941 = vadd.f32 %v434, %v877
        %v942 = vadd.f32 %v499, %v878
        %v943 = vadd.f32 %v564, %v879
        %v944 = vadd.f32 %v629, %v880
        %v945 = vadd.f32 %v437, %v881
        %v946 = vadd.f32 %v502, %v882
        %v947 = vadd.f32 %v567, %v883
        %v948 = vadd.f32 %v632, %v884
        %v949 = vadd.f32 %v440, %v885
        %v950 = vadd.f32 %v505, %v886
        %v951 = vadd.f32 %v570, %v887
        %v952 = vadd.f32 %v635, %v888
        %v953 = vadd.f32 %v443, %v889
        %v954 = vadd.f32 %v508, %v890
        %v955 = vadd.f32 %v573, %v891
        %v956 = vadd.f32 %v638, %v892
        %v957 = vadd.f32 %v446, %v893
        %v958 = vadd.f32 %v511, %v894
        %v959 = vadd.f32 %v576, %v895
        %v960 = vadd.f32 %v641, %v896
        %v961 = vadd.f32 %v449, %v897
        %v962 = vadd.f32 %v514, %v898
        %v963 = vadd.f32 %v579, %v899
        %v964 = vadd.f32 %v644, %v900
        %v965 = vadd.f32 %v452, %v901
        %v966 = vadd.f32 %v517, %v902
        %v967 = vadd.f32 %v582, %v903
        %v968 = vadd.f32 %v647, %v904
        %v969 = vmul.f32 %v905, 0.7978846
        %v970 = vmul.f32 %v906, 0.7978846
        %v971 = vmul.f32 %v907, 0.7978846
        %v972 = vmul.f32 %v908, 0.7978846
        %v973 = vmul.f32 %v909, 0.7978846
        %v974 = vmul.f32 %v910, 0.7978846
        %v975 = vmul.f32 %v911, 0.7978846
        %v976 = vmul.f32 %v912, 0.7978846
        %v977 = vmul.f32 %v913, 0.7978846
        %v978 = vmul.f32 %v914, 0.7978846
        %v979 = vmul.f32 %v915, 0.7978846
        %v980 = vmul.f32 %v916, 0.7978846
        %v981 = vmul.f32 %v917, 0.7978846
        %v982 = vmul.f32 %v918, 0.7978846
        %v983 = vmul.f32 %v919, 0.7978846
        %v984 = vmul.f32 %v920, 0.7978846
        %v985 = vmul.f32 %v921, 0.7978846
        %v986 = vmul.f32 %v922, 0.7978846
        %v987 = vmul.f32 %v923, 0.7978846
        %v988 = vmul.f32 %v924, 0.7978846
        %v989 = vmul.f32 %v925, 0.7978846
        %v990 = vmul.f32 %v926, 0.7978846
        %v991 = vmul.f32 %v927, 0.7978846
        %v992 = vmul.f32 %v928, 0.7978846
        %v993 = vmul.f32 %v929, 0.7978846
        %v994 = vmul.f32 %v930, 0.7978846
        %v995 = vmul.f32 %v931, 0.7978846
        %v996 = vmul.f32 %v932, 0.7978846
        %v997 = vmul.f32 %v933, 0.7978846
        %v998 = vmul.f32 %v934, 0.7978846
        %v999 = vmul.f32 %v935, 0.7978846
        %v1000 = vmul.f32 %v936, 0.7978846
        %v1001 = vmul.f32 %v937, 0.7978846
        %v1002 = vmul.f32 %v938, 0.7978846
        %v1003 = vmul.f32 %v939, 0.7978846
        %v1004 = vmul.f32 %v940, 0.7978846
        %v1005 = vmul.f32 %v941, 0.7978846
        %v1006 = vmul.f32 %v942, 0.7978846
        %v1007 = vmul.f32 %v943, 0.7978846
        %v1008 = vmul.f32 %v944, 0.7978846
        %v1009 = vmul.f32 %v945, 0.7978846
        %v1010 = vmul.f32 %v946, 0.7978846
        %v1011 = vmul.f32 %v947, 0.7978846
        %v1012 = vmul.f32 %v948, 0.7978846
        %v1013 = vmul.f32 %v949, 0.7978846
        %v1014 = vmul.f32 %v950, 0.7978846
        %v1015 = vmul.f32 %v951, 0.7978846
        %v1016 = vmul.f32 %v952, 0.7978846
        %v1017 = vmul.f32 %v953, 0.7978846
        %v1018 = vmul.f32 %v954, 0.7978846
        %v1019 = vmul.f32 %v955, 0.7978846
        %v1020 = vmul.f32 %v956, 0.7978846
        %v1021 = vmul.f32 %v957, 0.7978846
        %v1022 = vmul.f32 %v958, 0.7978846
        %v1023 = vmul.f32 %v959, 0.7978846
        %v1024 = vmul.f32 %v960, 0.7978846
        %v1025 = vmul.f32 %v961, 0.7978846
        %v1026 = vmul.f32 %v962, 0.7978846
        %v1027 = vmul.f32 %v963, 0.7978846
        %v1028 = vmul.f32 %v964, 0.7978846
        %v1029 = vmul.f32 %v965, 0.7978846
        %v1030 = vmul.f32 %v966, 0.7978846
        %v1031 = vmul.f32 %v967, 0.7978846
        %v1032 = vmul.f32 %v968, 0.7978846
        %v1033 = vtanh.pop %v969
        %v1034 = vtanh.pop %v970
        %v1035 = vtanh.pop %v971
        %v1036 = vtanh.pop %v972
        %v1037 = vtanh.pop %v973
        %v1038 = vtanh.pop %v974
        %v1039 = vtanh.pop %v975
        %v1040 = vtanh.pop %v976
        %v1041 = vtanh.pop %v977
        %v1042 = vtanh.pop %v978
        %v1043 = vtanh.pop %v979
        %v1044 = vtanh.pop %v980
        %v1045 = vtanh.pop %v981
        %v1046 = vtanh.pop %v982
        %v1047 = vtanh.pop %v983
        %v1048 = vtanh.pop %v984
        %v1049 = vtanh.pop %v985
        %v1050 = vtanh.pop %v986
        %v1051 = vtanh.pop %v987
        %v1052 = vtanh.pop %v988
        %v1053 = vtanh.pop %v989
        %v1054 = vtanh.pop %v990
        %v1055 = vtanh.pop %v991
        %v1056 = vtanh.pop %v992
        %v1057 = vtanh.pop %v993
        %v1058 = vtanh.pop %v994
        %v1059 = vtanh.pop %v995
        %v1060 = vtanh.pop %v996
        %v1061 = vtanh.pop %v997
        %v1062 = vtanh.pop %v998
        %v1063 = vtanh.pop %v999
        %v1064 = vtanh.pop %v1000
        %v1065 = vtanh.pop %v1001
        %v1066 = vtanh.pop %v1002
        %v1067 = vtanh.pop %v1003
        %v1068 = vtanh.pop %v1004
        %v1069 = vtanh.pop %v1005
        %v1070 = vtanh.pop %v1006
        %v1071 = vtanh.pop %v1007
        %v1072 = vtanh.pop %v1008
        %v1073 = vtanh.pop %v1009
        %v1074 = vtanh.pop %v1010
        %v1075 = vtanh.pop %v1011
        %v1076 = vtanh.pop %v1012
        %v1077 = vtanh.pop %v1013
        %v1078 = vtanh.pop %v1014
        %v1079 = vtanh.pop %v1015
        %v1080 = vtanh.pop %v1016
        %v1081 = vtanh.pop %v1017
        %v1082 = vtanh.pop %v1018
        %v1083 = vtanh.pop %v1019
        %v1084 = vtanh.pop %v1020
        %v1085 = vtanh.pop %v1021
        %v1086 = vtanh.pop %v1022
        %v1087 = vtanh.pop %v1023
        %v1088 = vtanh.pop %v1024
        %v1089 = vtanh.pop %v1025
        %v1090 = vtanh.pop %v1026
        %v1091 = vtanh.pop %v1027
        %v1092 = vtanh.pop %v1028
        %v1093 = vtanh.pop %v1029
        %v1094 = vtanh.pop %v1030
        %v1095 = vtanh.pop %v1031
        %v1096 = vtanh.pop %v1032
        %v1097 = vadd.f32 %v1033, 1.0
        %v1098 = vadd.f32 %v1034, 1.0
        %v1099 = vadd.f32 %v1035, 1.0
        %v1100 = vadd.f32 %v1036, 1.0
        %v1101 = vadd.f32 %v1037, 1.0
        %v1102 = vadd.f32 %v1038, 1.0
        %v1103 = vadd.f32 %v1039, 1.0
        %v1104 = vadd.f32 %v1040, 1.0
        %v1105 = vadd.f32 %v1041, 1.0
        %v1106 = vadd.f32 %v1042, 1.0
        %v1107 = vadd.f32 %v1043, 1.0
        %v1108 = vadd.f32 %v1044, 1.0
        %v1109 = vadd.f32 %v1045, 1.0
        %v1110 = vadd.f32 %v1046, 1.0
        %v1111 = vadd.f32 %v1047, 1.0
        %v1112 = vadd.f32 %v1048, 1.0
        %v1113 = vadd.f32 %v1049, 1.0
        %v1114 = vadd.f32 %v1050, 1.0
        %v1115 = vadd.f32 %v1051, 1.0
        %v1116 = vadd.f32 %v1052, 1.0
        %v1117 = vadd.f32 %v1053, 1.0
        %v1118 = vadd.f32 %v1054, 1.0
        %v1119 = vadd.f32 %v1055, 1.0
        %v1120 = vadd.f32 %v1056, 1.0
        %v1121 = vadd.f32 %v1057, 1.0
        %v1122 = vadd.f32 %v1058, 1.0
        %v1123 = vadd.f32 %v1059, 1.0
        %v1124 = vadd.f32 %v1060, 1.0
        %v1125 = vadd.f32 %v1061, 1.0
        %v1126 = vadd.f32 %v1062, 1.0
        %v1127 = vadd.f32 %v1063, 1.0
        %v1128 = vadd.f32 %v1064, 1.0
        %v1129 = vadd.f32 %v1065, 1.0
        %v1130 = vadd.f32 %v1066, 1.0
        %v1131 = vadd.f32 %v1067, 1.0
        %v1132 = vadd.f32 %v1068, 1.0
        %v1133 = vadd.f32 %v1069, 1.0
        %v1134 = vadd.f32 %v1070, 1.0
        %v1135 = vadd.f32 %v1071, 1.0
        %v1136 = vadd.f32 %v1072, 1.0
        %v1137 = vadd.f32 %v1073, 1.0
        %v1138 = vadd.f32 %v1074, 1.0
        %v1139 = vadd.f32 %v1075, 1.0
        %v1140 = vadd.f32 %v1076, 1.0
        %v1141 = vadd.f32 %v1077, 1.0
        %v1142 = vadd.f32 %v1078, 1.0
        %v1143 = vadd.f32 %v1079, 1.0
        %v1144 = vadd.f32 %v1080, 1.0
        %v1145 = vadd.f32 %v1081, 1.0
        %v1146 = vadd.f32 %v1082, 1.0
        %v1147 = vadd.f32 %v1083, 1.0
        %v1148 = vadd.f32 %v1084, 1.0
        %v1149 = vadd.f32 %v1085, 1.0
        %v1150 = vadd.f32 %v1086, 1.0
        %v1151 = vadd.f32 %v1087, 1.0
        %v1152 = vadd.f32 %v1088, 1.0
        %v1153 = vadd.f32 %v1089, 1.0
        %v1154 = vadd.f32 %v1090, 1.0
        %v1155 = vadd.f32 %v1091, 1.0
        %v1156 = vadd.f32 %v1092, 1.0
        %v1157 = vadd.f32 %v1093, 1.0
        %v1158 = vadd.f32 %v1094, 1.0
        %v1159 = vadd.f32 %v1095, 1.0
        %v1160 = vadd.f32 %v1096, 1.0
        %v1161 = vmul.f32 %v649, %v1097
        %v1162 = vmul.f32 %v650, %v1098
        %v1163 = vmul.f32 %v651, %v1099
        %v1164 = vmul.f32 %v652, %v1100
        %v1165 = vmul.f32 %v653, %v1101
        %v1166 = vmul.f32 %v654, %v1102
        %v1167 = vmul.f32 %v655, %v1103
        %v1168 = vmul.f32 %v656, %v1104
        %v1169 = vmul.f32 %v657, %v1105
        %v1170 = vmul.f32 %v658, %v1106
        %v1171 = vmul.f32 %v659, %v1107
        %v1172 = vmul.f32 %v660, %v1108
        %v1173 = vmul.f32 %v661, %v1109
        %v1174 = vmul.f32 %v662, %v1110
        %v1175 = vmul.f32 %v663, %v1111
        %v1176 = vmul.f32 %v664, %v1112
        %v1177 = vmul.f32 %v665, %v1113
        %v1178 = vmul.f32 %v666, %v1114
        %v1179 = vmul.f32 %v667, %v1115
        %v1180 = vmul.f32 %v668, %v1116
        %v1181 = vmul.f32 %v669, %v1117
        %v1182 = vmul.f32 %v670, %v1118
        %v1183 = vmul.f32 %v671, %v1119
        %v1184 = vmul.f32 %v672, %v1120
        %v1185 = vmul.f32 %v673, %v1121
        %v1186 = vmul.f32 %v674, %v1122
        %v1187 = vmul.f32 %v675, %v1123
        %v1188 = vmul.f32 %v676, %v1124
        %v1189 = vmul.f32 %v677, %v1125
        %v1190 = vmul.f32 %v678, %v1126
        %v1191 = vmul.f32 %v679, %v1127
        %v1192 = vmul.f32 %v680, %v1128
        %v1193 = vmul.f32 %v681, %v1129
        %v1194 = vmul.f32 %v682, %v1130
        %v1195 = vmul.f32 %v683, %v1131
        %v1196 = vmul.f32 %v684, %v1132
        %v1197 = vmul.f32 %v685, %v1133
        %v1198 = vmul.f32 %v686, %v1134
        %v1199 = vmul.f32 %v687, %v1135
        %v1200 = vmul.f32 %v688, %v1136
        %v1201 = vmul.f32 %v689, %v1137
        %v1202 = vmul.f32 %v690, %v1138
        %v1203 = vmul.f32 %v691, %v1139
        %v1204 = vmul.f32 %v692, %v1140
        %v1205 = vmul.f32 %v693, %v1141
        %v1206 = vmul.f32 %v694, %v1142
        %v1207 = vmul.f32 %v695, %v1143
        %v1208 = vmul.f32 %v696, %v1144
        %v1209 = vmul.f32 %v697, %v1145
        %v1210 = vmul.f32 %v698, %v1146
        %v1211 = vmul.f32 %v699, %v1147
        %v1212 = vmul.f32 %v700, %v1148
        %v1213 = vmul.f32 %v701, %v1149
        %v1214 = vmul.f32 %v702, %v1150
        %v1215 = vmul.f32 %v703, %v1151
        %v1216 = vmul.f32 %v704, %v1152
        %v1217 = vmul.f32 %v705, %v1153
        %v1218 = vmul.f32 %v706, %v1154
        %v1219 = vmul.f32 %v707, %v1155
        %v1220 = vmul.f32 %v708, %v1156
        %v1221 = vmul.f32 %v709, %v1157
        %v1222 = vmul.f32 %v710, %v1158
        %v1223 = vmul.f32 %v711, %v1159
        %v1224 = vmul.f32 %v712, %v1160
        %v1225 = vld [vmem:[#allocation8] sm:$0xff]
        %v1226 = vld [vmem:[#allocation8 + $0x8] sm:$0xff]
        %v1227 = vld [vmem:[#allocation8 + $0x10] sm:$0xff]
        %v1228 = vld [vmem:[#allocation8 + $0x18] sm:$0xff]
        %v1229 = vld [vmem:[#allocation8 + $0x20] sm:$0xff]
        %v1230 = vld [vmem:[#allocation8 + $0x28] sm:$0xff]
        %v1231 = vld [vmem:[#allocation8 + $0x30] sm:$0xff]
        %v1232 = vld [vmem:[#allocation8 + $0x38] sm:$0xff]
        %v1233 = vld [vmem:[#allocation8 + $0x40] sm:$0xff]
        %v1234 = vld [vmem:[#allocation8 + $0x48] sm:$0xff]
        %v1235 = vld [vmem:[#allocation8 + $0x50] sm:$0xff]
        %v1236 = vld [vmem:[#allocation8 + $0x58] sm:$0xff]
        %v1237 = vld [vmem:[#allocation8 + $0x60] sm:$0xff]
        %v1238 = vld [vmem:[#allocation8 + $0x68] sm:$0xff]
        %v1239 = vld [vmem:[#allocation8 + $0x70] sm:$0xff]
        %v1240 = vld [vmem:[#allocation8 + $0x78] sm:$0xff]
        %v1241 = vld [vmem:[#allocation8 + $0x80] sm:$0xff]
        %v1242 = vld [vmem:[#allocation8 + $0x88] sm:$0xff]
        %v1243 = vld [vmem:[#allocation8 + $0x90] sm:$0xff]
        %v1244 = vld [vmem:[#allocation8 + $0x98] sm:$0xff]
        %v1245 = vld [vmem:[#allocation8 + $0xa0] sm:$0xff]
        %v1246 = vld [vmem:[#allocation8 + $0xa8] sm:$0xff]
        %v1247 = vld [vmem:[#allocation8 + $0xb0] sm:$0xff]
        %v1248 = vld [vmem:[#allocation8 + $0xb8] sm:$0xff]
        %v1249 = vld [vmem:[#allocation8 + $0xc0] sm:$0xff]
        %v1250 = vld [vmem:[#allocation8 + $0xc8] sm:$0xff]
        %v1251 = vld [vmem:[#allocation8 + $0xd0] sm:$0xff]
        %v1252 = vld [vmem:[#allocation8 + $0xd8] sm:$0xff]
        %v1253 = vld [vmem:[#allocation8 + $0xe0] sm:$0xff]
        %v1254 = vld [vmem:[#allocation8 + $0xe8] sm:$0xff]
        %v1255 = vld [vmem:[#allocation8 + $0xf0] sm:$0xff]
        %v1256 = vld [vmem:[#allocation8 + $0xf8] sm:$0xff]
        %v1257 = vld [vmem:[#allocation8 + $0x100] sm:$0xff]
        %v1258 = vld [vmem:[#allocation8 + $0x108] sm:$0xff]
        %v1259 = vld [vmem:[#allocation8 + $0x110] sm:$0xff]
        %v1260 = vld [vmem:[#allocation8 + $0x118] sm:$0xff]
        %v1261 = vld [vmem:[#allocation8 + $0x120] sm:$0xff]
        %v1262 = vld [vmem:[#allocation8 + $0x128] sm:$0xff]
        %v1263 = vld [vmem:[#allocation8 + $0x130] sm:$0xff]
        %v1264 = vld [vmem:[#allocation8 + $0x138] sm:$0xff]
        %v1265 = vld [vmem:[#allocation8 + $0x140] sm:$0xff]
        %v1266 = vld [vmem:[#allocation8 + $0x148] sm:$0xff]
        %v1267 = vld [vmem:[#allocation8 + $0x150] sm:$0xff]
        %v1268 = vld [vmem:[#allocation8 + $0x158] sm:$0xff]
        %v1269 = vld [vmem:[#allocation8 + $0x160] sm:$0xff]
        %v1270 = vld [vmem:[#allocation8 + $0x168] sm:$0xff]
        %v1271 = vld [vmem:[#allocation8 + $0x170] sm:$0xff]
        %v1272 = vld [vmem:[#allocation8 + $0x178] sm:$0xff]
        %v1273 = vld [vmem:[#allocation8 + $0x180] sm:$0xff]
        %v1274 = vld [vmem:[#allocation8 + $0x188] sm:$0xff]
        %v1275 = vld [vmem:[#allocation8 + $0x190] sm:$0xff]
        %v1276 = vld [vmem:[#allocation8 + $0x198] sm:$0xff]
        %v1277 = vld [vmem:[#allocation8 + $0x1a0] sm:$0xff]
        %v1278 = vld [vmem:[#allocation8 + $0x1a8] sm:$0xff]
        %v1279 = vld [vmem:[#allocation8 + $0x1b0] sm:$0xff]
        %v1280 = vld [vmem:[#allocation8 + $0x1b8] sm:$0xff]
        %v1281 = vld [vmem:[#allocation8 + $0x1c0] sm:$0xff]
        %v1282 = vld [vmem:[#allocation8 + $0x1c8] sm:$0xff]
        %v1283 = vld [vmem:[#allocation8 + $0x1d0] sm:$0xff]
        %v1284 = vld [vmem:[#allocation8 + $0x1d8] sm:$0xff]
        %v1285 = vld [vmem:[#allocation8 + $0x1e0] sm:$0xff]
        %v1286 = vld [vmem:[#allocation8 + $0x1e8] sm:$0xff]
        %v1287 = vld [vmem:[#allocation8 + $0x1f0] sm:$0xff]
        %v1288 = vld [vmem:[#allocation8 + $0x1f8] sm:$0xff]
        %1289 = vmatpush.msra.mxu0 %v1240
        %1290 = vmatpush.msra.mxu0 %v1239
        %1291 = vmatpush.msra.mxu0 %v1238
        %1292 = vmatpush.msra.mxu0 %v1237
        %1293 = vmatpush.msra.mxu0 %v1236
        %1294 = vmatpush.msra.mxu0 %v1235
        %1295 = vmatpush.msra.mxu0 %v1234
        %1296 = vmatpush.msra.mxu0 %v1233
        %1297 = vmatpush.msra.mxu0 %v1232
        %1298 = vmatpush.msra.mxu0 %v1231
        %1299 = vmatpush.msra.mxu0 %v1230
        %1300 = vmatpush.msra.mxu0 %v1229
        %1301 = vmatpush.msra.mxu0 %v1228
        %1302 = vmatpush.msra.mxu0 %v1227
        %1303 = vmatpush.msra.mxu0 %v1226
        %1304 = vmatpush.msra.mxu0 %v1225
        %1305 = vmatmul.f32.gmra.mxu0 %v1161
        %v1306 = vpop.f32.mrf.mxu0
        %v1307 = vadd.f32 0.0, %v1306
        %1308 = vmatmul.f32.gmra.mxu0 %v1165
        %v1309 = vpop.f32.mrf.mxu0
        %v1310 = vadd.f32 0.0, %v1309
        %1311 = vmatmul.f32.gmra.mxu0 %v1169
        %v1312 = vpop.f32.mrf.mxu0
        %v1313 = vadd.f32 0.0, %v1312
        %1314 = vmatmul.f32.gmra.mxu0 %v1173
        %v1315 = vpop.f32.mrf.mxu0
        %v1316 = vadd.f32 0.0, %v1315
        %1317 = vmatmul.f32.gmra.mxu0 %v1177
        %v1318 = vpop.f32.mrf.mxu0
        %v1319 = vadd.f32 0.0, %v1318
        %1320 = vmatmul.f32.gmra.mxu0 %v1181
        %v1321 = vpop.f32.mrf.mxu0
        %v1322 = vadd.f32 0.0, %v1321
        %1323 = vmatmul.f32.gmra.mxu0 %v1185
        %v1324 = vpop.f32.mrf.mxu0
        %v1325 = vadd.f32 0.0, %v1324
        %1326 = vmatmul.f32.gmra.mxu0 %v1189
        %v1327 = vpop.f32.mrf.mxu0
        %v1328 = vadd.f32 0.0, %v1327
        %1329 = vmatmul.f32.gmra.mxu0 %v1193
        %v1330 = vpop.f32.mrf.mxu0
        %v1331 = vadd.f32 0.0, %v1330
        %1332 = vmatmul.f32.gmra.mxu0 %v1197
        %v1333 = vpop.f32.mrf.mxu0
        %v1334 = vadd.f32 0.0, %v1333
        %1335 = vmatmul.f32.gmra.mxu0 %v1201
        %v1336 = vpop.f32.mrf.mxu0
        %v1337 = vadd.f32 0.0, %v1336
        %1338 = vmatmul.f32.gmra.mxu0 %v1205
        %v1339 = vpop.f32.mrf.mxu0
        %v1340 = vadd.f32 0.0, %v1339
        %1341 = vmatmul.f32.gmra.mxu0 %v1209
        %v1342 = vpop.f32.mrf.mxu0
        %v1343 = vadd.f32 0.0, %v1342
        %1344 = vmatmul.f32.gmra.mxu0 %v1213
        %v1345 = vpop.f32.mrf.mxu0
        %v1346 = vadd.f32 0.0, %v1345
        %1347 = vmatmul.f32.gmra.mxu0 %v1217
        %v1348 = vpop.f32.mrf.mxu0
        %v1349 = vadd.f32 0.0, %v1348
        %1350 = vmatmul.f32.gmra.mxu0 %v1221
        %v1351 = vpop.f32.mrf.mxu0
        %v1352 = vadd.f32 0.0, %v1351
        %1353 = vdwg.mxu0
        %1354 = vmatpush.msra.mxu0 %v1256
        %1355 = vmatpush.msra.mxu0 %v1255
        %1356 = vmatpush.msra.mxu0 %v1254
        %1357 = vmatpush.msra.mxu0 %v1253
        %1358 = vmatpush.msra.mxu0 %v1252
        %1359 = vmatpush.msra.mxu0 %v1251
        %1360 = vmatpush.msra.mxu0 %v1250
        %1361 = vmatpush.msra.mxu0 %v1249
        %1362 = vmatpush.msra.mxu0 %v1248
        %1363 = vmatpush.msra.mxu0 %v1247
        %1364 = vmatpush.msra.mxu0 %v1246
        %1365 = vmatpush.msra.mxu0 %v1245
        %1366 = vmatpush.msra.mxu0 %v1244
        %1367 = vmatpush.msra.mxu0 %v1243
        %1368 = vmatpush.msra.mxu0 %v1242
        %1369 = vmatpush.msra.mxu0 %v1241
        %1370 = vmatmul.f32.gmra.mxu0 %v1162
        %v1371 = vpop.f32.mrf.mxu0
        %v1372 = vadd.f32 %v1307, %v1371
        %1373 = vmatmul.f32.gmra.mxu0 %v1166
        %v1374 = vpop.f32.mrf.mxu0
        %v1375 = vadd.f32 %v1310, %v1374
        %1376 = vmatmul.f32.gmra.mxu0 %v1170
        %v1377 = vpop.f32.mrf.mxu0
        %v1378 = vadd.f32 %v1313, %v1377
        %1379 = vmatmul.f32.gmra.mxu0 %v1174
        %v1380 = vpop.f32.mrf.mxu0
        %v1381 = vadd.f32 %v1316, %v1380
        %1382 = vmatmul.f32.gmra.mxu0 %v1178
        %v1383 = vpop.f32.mrf.mxu0
        %v1384 = vadd.f32 %v1319, %v1383
        %1385 = vmatmul.f32.gmra.mxu0 %v1182
        %v1386 = vpop.f32.mrf.mxu0
        %v1387 = vadd.f32 %v1322, %v1386
        %1388 = vmatmul.f32.gmra.mxu0 %v1186
        %v1389 = vpop.f32.mrf.mxu0
        %v1390 = vadd.f32 %v1325, %v1389
        %1391 = vmatmul.f32.gmra.mxu0 %v1190
        %v1392 = vpop.f32.mrf.mxu0
        %v1393 = vadd.f32 %v1328, %v1392
        %1394 = vmatmul.f32.gmra.mxu0 %v1194
        %v1395 = vpop.f32.mrf.mxu0
        %v1396 = vadd.f32 %v1331, %v1395
        %1397 = vmatmul.f32.gmra.mxu0 %v1198
        %v1398 = vpop.f32.mrf.mxu0
        %v1399 = vadd.f32 %v1334, %v1398
        %1400 = vmatmul.f32.gmra.mxu0 %v1202
        %v1401 = vpop.f32.mrf.mxu0
        %v1402 = vadd.f32 %v1337, %v1401
        %1403 = vmatmul.f32.gmra.mxu0 %v1206
        %v1404 = vpop.f32.mrf.mxu0
        %v1405 = vadd.f32 %v1340, %v1404
        %1406 = vmatmul.f32.gmra.mxu0 %v1210
        %v1407 = vpop.f32.mrf.mxu0
        %v1408 = vadd.f32 %v1343, %v1407
        %1409 = vmatmul.f32.gmra.mxu0 %v1214
        %v1410 = vpop.f32.mrf.mxu0
        %v1411 = vadd.f32 %v1346, %v1410
        %1412 = vmatmul.f32.gmra.mxu0 %v1218
        %v1413 = vpop.f32.mrf.mxu0
        %v1414 = vadd.f32 %v1349, %v1413
        %1415 = vmatmul.f32.gmra.mxu0 %v1222
        %v1416 = vpop.f32.mrf.mxu0
        %v1417 = vadd.f32 %v1352, %v1416
        %1418 = vdwg.mxu0
        %1419 = vmatpush.msra.mxu0 %v1272
        %1420 = vmatpush.msra.mxu0 %v1271
        %1421 = vmatpush.msra.mxu0 %v1270
        %1422 = vmatpush.msra.mxu0 %v1269
        %1423 = vmatpush.msra.mxu0 %v1268
        %1424 = vmatpush.msra.mxu0 %v1267
        %1425 = vmatpush.msra.mxu0 %v1266
        %1426 = vmatpush.msra.mxu0 %v1265
        %1427 = vmatpush.msra.mxu0 %v1264
        %1428 = vmatpush.msra.mxu0 %v1263
        %1429 = vmatpush.msra.mxu0 %v1262
        %1430 = vmatpush.msra.mxu0 %v1261
        %1431 = vmatpush.msra.mxu0 %v1260
        %1432 = vmatpush.msra.mxu0 %v1259
        %1433 = vmatpush.msra.mxu0 %v1258
        %1434 = vmatpush.msra.mxu0 %v1257
        %1435 = vmatmul.f32.gmra.mxu0 %v1163
        %v1436 = vpop.f32.mrf.mxu0
        %v1437 = vadd.f32 %v1372, %v1436
        %1438 = vmatmul.f32.gmra.mxu0 %v1167
        %v1439 = vpop.f32.mrf.mxu0
        %v1440 = vadd.f32 %v1375, %v1439
        %1441 = vmatmul.f32.gmra.mxu0 %v1171
        %v1442 = vpop.f32.mrf.mxu0
        %v1443 = vadd.f32 %v1378, %v1442
        %1444 = vmatmul.f32.gmra.mxu0 %v1175
        %v1445 = vpop.f32.mrf.mxu0
        %v1446 = vadd.f32 %v1381, %v1445
        %1447 = vmatmul.f32.gmra.mxu0 %v1179
        %v1448 = vpop.f32.mrf.mxu0
        %v1449 = vadd.f32 %v1384, %v1448
        %1450 = vmatmul.f32.gmra.mxu0 %v1183
        %v1451 = vpop.f32.mrf.mxu0
        %v1452 = vadd.f32 %v1387, %v1451
        %1453 = vmatmul.f32.gmra.mxu0 %v1187
        %v1454 = vpop.f32.mrf.mxu0
        %v1455 = vadd.f32 %v1390, %v1454
        %1456 = vmatmul.f32.gmra.mxu0 %v1191
        %v1457 = vpop.f32.mrf.mxu0
        %v1458 = vadd.f32 %v1393, %v1457
        %1459 = vmatmul.f32.gmra.mxu0 %v1195
        %v1460 = vpop.f32.mrf.mxu0
        %v1461 = vadd.f32 %v1396, %v1460
        %1462 = vmatmul.f32.gmra.mxu0 %v1199
        %v1463 = vpop.f32.mrf.mxu0
        %v1464 = vadd.f32 %v1399, %v1463
        %1465 = vmatmul.f32.gmra.mxu0 %v1203
        %v1466 = vpop.f32.mrf.mxu0
        %v1467 = vadd.f32 %v1402, %v1466
        %1468 = vmatmul.f32.gmra.mxu0 %v1207
        %v1469 = vpop.f32.mrf.mxu0
        %v1470 = vadd.f32 %v1405, %v1469
        %1471 = vmatmul.f32.gmra.mxu0 %v1211
        %v1472 = vpop.f32.mrf.mxu0
        %v1473 = vadd.f32 %v1408, %v1472
        %1474 = vmatmul.f32.gmra.mxu0 %v1215
        %v1475 = vpop.f32.mrf.mxu0
        %v1476 = vadd.f32 %v1411, %v1475
        %1477 = vmatmul.f32.gmra.mxu0 %v1219
        %v1478 = vpop.f32.mrf.mxu0
        %v1479 = vadd.f32 %v1414, %v1478
        %1480 = vmatmul.f32.gmra.mxu0 %v1223
        %v1481 = vpop.f32.mrf.mxu0
        %v1482 = vadd.f32 %v1417, %v1481
        %1483 = vdwg.mxu0
        %1484 = vmatpush.msra.mxu0 %v1288
        %1485 = vmatpush.msra.mxu0 %v1287
        %1486 = vmatpush.msra.mxu0 %v1286
        %1487 = vmatpush.msra.mxu0 %v1285
        %1488 = vmatpush.msra.mxu0 %v1284
        %1489 = vmatpush.msra.mxu0 %v1283
        %1490 = vmatpush.msra.mxu0 %v1282
        %1491 = vmatpush.msra.mxu0 %v1281
        %1492 = vmatpush.msra.mxu0 %v1280
        %1493 = vmatpush.msra.mxu0 %v1279
        %1494 = vmatpush.msra.mxu0 %v1278
        %1495 = vmatpush.msra.mxu0 %v1277
        %1496 = vmatpush.msra.mxu0 %v1276
        %1497 = vmatpush.msra.mxu0 %v1275
        %1498 = vmatpush.msra.mxu0 %v1274
        %1499 = vmatpush.msra.mxu0 %v1273
        %1500 = vmatmul.f32.gmra.mxu0 %v1164
        %v1501 = vpop.f32.mrf.mxu0
        %v1502 = vadd.f32 %v1437, %v1501
        %1503 = vmatmul.f32.gmra.mxu0 %v1168
        %v1504 = vpop.f32.mrf.mxu0
        %v1505 = vadd.f32 %v1440, %v1504
        %1506 = vmatmul.f32.gmra.mxu0 %v1172
        %v1507 = vpop.f32.mrf.mxu0
        %v1508 = vadd.f32 %v1443, %v1507
        %1509 = vmatmul.f32.gmra.mxu0 %v1176
        %v1510 = vpop.f32.mrf.mxu0
        %v1511 = vadd.f32 %v1446, %v1510
        %1512 = vmatmul.f32.gmra.mxu0 %v1180
        %v1513 = vpop.f32.mrf.mxu0
        %v1514 = vadd.f32 %v1449, %v1513
        %1515 = vmatmul.f32.gmra.mxu0 %v1184
        %v1516 = vpop.f32.mrf.mxu0
        %v1517 = vadd.f32 %v1452, %v1516
        %1518 = vmatmul.f32.gmra.mxu0 %v1188
        %v1519 = vpop.f32.mrf.mxu0
        %v1520 = vadd.f32 %v1455, %v1519
        %1521 = vmatmul.f32.gmra.mxu0 %v1192
        %v1522 = vpop.f32.mrf.mxu0
        %v1523 = vadd.f32 %v1458, %v1522
        %1524 = vmatmul.f32.gmra.mxu0 %v1196
        %v1525 = vpop.f32.mrf.mxu0
        %v1526 = vadd.f32 %v1461, %v1525
        %1527 = vmatmul.f32.gmra.mxu0 %v1200
        %v1528 = vpop.f32.mrf.mxu0
        %v1529 = vadd.f32 %v1464, %v1528
        %1530 = vmatmul.f32.gmra.mxu0 %v1204
        %v1531 = vpop.f32.mrf.mxu0
        %v1532 = vadd.f32 %v1467, %v1531
        %1533 = vmatmul.f32.gmra.mxu0 %v1208
        %v1534 = vpop.f32.mrf.mxu0
        %v1535 = vadd.f32 %v1470, %v1534
        %1536 = vmatmul.f32.gmra.mxu0 %v1212
        %v1537 = vpop.f32.mrf.mxu0
        %v1538 = vadd.f32 %v1473, %v1537
        %1539 = vmatmul.f32.gmra.mxu0 %v1216
        %v1540 = vpop.f32.mrf.mxu0
        %v1541 = vadd.f32 %v1476, %v1540
        %1542 = vmatmul.f32.gmra.mxu0 %v1220
        %v1543 = vpop.f32.mrf.mxu0
        %v1544 = vadd.f32 %v1479, %v1543
        %1545 = vmatmul.f32.gmra.mxu0 %v1224
        %v1546 = vpop.f32.mrf.mxu0
        %v1547 = vadd.f32 %v1482, %v1546
        %1548 = vdwg.mxu0
        %v1549 = vadd.f32 %v313, %v1502
        %v1550 = vadd.f32 %v313, %v1505
        %v1551 = vadd.f32 %v313, %v1508
        %v1552 = vadd.f32 %v313, %v1511
        %v1553 = vadd.f32 %v313, %v1514
        %v1554 = vadd.f32 %v313, %v1517
        %v1555 = vadd.f32 %v313, %v1520
        %v1556 = vadd.f32 %v313, %v1523
        %v1557 = vadd.f32 %v313, %v1526
        %v1558 = vadd.f32 %v313, %v1529
        %v1559 = vadd.f32 %v313, %v1532
        %v1560 = vadd.f32 %v313, %v1535
        %v1561 = vadd.f32 %v313, %v1538
        %v1562 = vadd.f32 %v313, %v1541
        %v1563 = vadd.f32 %v313, %v1544
        %v1564 = vadd.f32 %v313, %v1547
        %1565 = vst [vmem:[%s292] sm:$0xff] %v1549
        %1566 = vst [vmem:[%s292 + $0x8] sm:$0xff] %v1550
        %1567 = vst [vmem:[%s292 + $0x10] sm:$0xff] %v1551
        %1568 = vst [vmem:[%s292 + $0x18] sm:$0xff] %v1552
        %1569 = vst [vmem:[%s292 + $0x20] sm:$0xff] %v1553
        %1570 = vst [vmem:[%s292 + $0x28] sm:$0xff] %v1554
        %1571 = vst [vmem:[%s292 + $0x30] sm:$0xff] %v1555
        %1572 = vst [vmem:[%s292 + $0x38] sm:$0xff] %v1556
        %1573 = vst [vmem:[%s292 + $0x40] sm:$0xff] %v1557
        %1574 = vst [vmem:[%s292 + $0x48] sm:$0xff] %v1558
        %1575 = vst [vmem:[%s292 + $0x50] sm:$0xff] %v1559
        %1576 = vst [vmem:[%s292 + $0x58] sm:$0xff] %v1560
        %1577 = vst [vmem:[%s292 + $0x60] sm:$0xff] %v1561
        %1578 = vst [vmem:[%s292 + $0x68] sm:$0xff] %v1562
        %1579 = vst [vmem:[%s292 + $0x70] sm:$0xff] %v1563
        %1580 = vst [vmem:[%s292 + $0x78] sm:$0xff] %v1564
        %s1581 = sand.u32 %s142, 1
        %s1582 = scalar_lea.sflag [#allocation4], %s1581
        %s1583 = sand.u32 %s142, 1
        %s1584 = smul.addr %s1583, 128
        %s1585 = scalar_lea.vmem [#allocation10], %s1584
        // Predicated region
        $region57: #{tpu_custom_call.1} parent=39 // pred_check
          %p1586 = pneg %p152
        $region58: #{tpu_custom_call.1} parent=39 // pred_check_branch
          %1588 = sbr.rel (%p1586) target = $region60
        $region59: #{tpu_custom_call.1} parent=39 // pred_region
          %s1589 = smul.u32 16, %s24
          %1591 = vsyncadd %s1582, 0
          %s1592 = smul.addr %s1589, 8
          %s1593 = scalar_lea.hbm %s5, %s1592
          %s1594 = sshll.u32 %s1585, 4
          %s1595 = int_to_ptr.vmem [resolvable:$true] %s1594
          %s1596 = sshll.u32 %s1593, 4
          %s1597 = int_to_ptr.hbm [resolvable:$true] %s1596
          %1602 = dma.vmem_to_hbm [thread:$0]  %s1595, 2048, %s1597, %s1582, 128, 128, 8
        $region60: #{tpu_custom_call.1} parent=39 // pred_fallthru
          _
      $region40: #{tpu_custom_call.1} parent=5 // pred_fallthru
        _
      %p1603 = scmp.le.s32.totalorder 2, %s19
      // Predicated region
      $region61: #{tpu_custom_call.1} parent=5 // pred_check
        %p1604 = pneg %p1603
      $region62: #{tpu_custom_call.1} parent=5 // pred_check_branch
        %1606 = sbr.rel (%p1604) target = $region64
      $region63: #{tpu_custom_call.1} parent=5 // pred_region
        %s1607 = ssub.s32 %s19, 2
        // Predicated region
        $region65: #{tpu_custom_call.1} parent=63 // pred_check
          %p1608 = pneg %p158
        $region66: #{tpu_custom_call.1} parent=63 // pred_check_branch
          %1610 = sbr.rel (%p1608) target = $region68
        $region67: #{tpu_custom_call.1} parent=63 // pred_region
          %s1611 = sand.u32 %s143, 1
          %s1612 = scalar_lea.sflag [#allocation4], %s1611
          %s1613 = sand.u32 %s143, 1
          %s1614 = smul.addr %s1613, 128
          %s1615 = scalar_lea.vmem [#allocation10], %s1614
          %1617 = dma.done %s1612, 2048
        $region68: #{tpu_custom_call.1} parent=63 // pred_fallthru
          _
      $region64: #{tpu_custom_call.1} parent=5 // pred_fallthru
        _
    $region6: #{tpu_custom_call.1} parent=1 // loop_footer
      %s23 = sadd.s32 1, %s19
    $region7: #{tpu_custom_call.1} parent=1 // loop_footer_branch
      %18 = sbr.rel target = $region3
    $region8: #{tpu_custom_call.1} parent=1 // loop_exit
      _
    %1618 = vsyncpa [#allocation3], 1
    %s1619 = scalar_lea.sflag [#allocation3], 1
    %1620 = vsyncpa %s1619, 1
    %1621 = vsyncpa [#allocation6], 1
    %1622 = vsyncpa [#allocation9], 1
    %1623 = vsyncpa [#allocation4], 1
    %s1624 = scalar_lea.sflag [#allocation4], 1
    %1625 = vsyncpa %s1624, 1

</llo_original>
